<compile_context>
chip_gen: v7x
topology: tpu7x:2x2x1
jax: 0.10.0
libtpu: 0.0.40
codegen_flags: <defaults>
</compile_context>

<pallas_src>
import math

import numpy as np
import jax
import jax.numpy as jnp
from jax.experimental import pallas as pl
from jax.experimental.pallas import tpu as pltpu

LEAKY_SLOPE = 0.02
BN_EPS = 1e-5


def _bilinear_upsample_matrix(n):
    """(2n, n) matrix reproducing F.interpolate(scale=2, mode='bilinear',
    align_corners=False) along one axis."""
    m = np.zeros((2 * n, n), np.float32)
    for o in range(2 * n):
        src = max((o + 0.5) / 2.0 - 0.5, 0.0)      # PyTorch clamps negative coords
        i0 = int(np.floor(src))
        lam = src - i0
        i1 = min(i0 + 1, n - 1)
        m[o, i0] += 1.0 - lam
        m[o, i1] += lam
    return m


def _build_matrices(weight, H, W, Cin, Cp, Cout):
    """Host-side (numpy) construction of the folded matmul operands."""
    H2, W2 = 2 * H, 2 * W
    Uh = _bilinear_upsample_matrix(H)                     # (2H, H)
    Uw = _bilinear_upsample_matrix(W)                     # (2W, W)

    # Row matrices with the kernel-row vertical shift folded in (zero rows = padding).
    uh_s = np.zeros((3, H2, H), np.float32)
    for r in range(3):
        lo = max(0, 1 - r)
        hi = min(H2, H2 + 1 - r)
        uh_s[r, lo:hi, :] = Uh[lo + r - 1:hi + r - 1, :]

    # Folded width-upsample * banded conv matrices: C_r = Mw @ B_r.
    Kw = np.zeros((3, 3, Cp, Cout), np.float32)
    Kw[:, :, :Cin, :] = np.asarray(weight, np.float32).transpose(2, 3, 1, 0)
    Mw = np.kron(Uw.T, np.eye(Cp, dtype=np.float32))      # (W*Cp, 2W*Cp)
    c_s = np.zeros((3, W * Cp, W2 * Cout), np.float32)
    for r in range(3):
        B = np.zeros((W2 * Cp, W2 * Cout), np.float32)
        for wo in range(W2):
            for kc in range(3):
                wi = wo + kc - 1
                if 0 <= wi < W2:
                    B[wi * Cp:(wi + 1) * Cp, wo * Cout:(wo + 1) * Cout] = Kw[r, kc]
        c_s[r] = Mw @ B
    return uh_s, c_s


def _conv_stats_kernel(x_ref, uh_ref, c_ref, conv_ref, sum_ref, sq_ref):
    # x_ref:    (1, H, W*Cp)        bf16  one sample (grid over N, "parallel")
    # uh_ref:   (3, 2H, H)          bf16  row-shifted bilinear row matrices
    # c_ref:    (3, W*Cp, 2W*Cout)  bf16  folded upsample*conv band matrices
    # conv_ref: (1, 2H, 2W*Cout)    f32   pre-BN conv output
    # sum_ref:  (1, 1, 2W*Cout)     f32   per-sample column sums        (BN mean)
    # sq_ref:   (1, 1, 2W*Cout)     f32   per-sample column sum-squares (BN var)
    x = x_ref[0]
    acc = jnp.zeros((conv_ref.shape[1], conv_ref.shape[2]), jnp.float32)
    for r in range(3):                                    # static: 3 kernel rows
        y = jnp.dot(uh_ref[r], x, preferred_element_type=jnp.float32)
        acc = acc + jnp.dot(y.astype(jnp.bfloat16), c_ref[r],
                            preferred_element_type=jnp.float32)
    conv_ref[0] = acc
    sum_ref[0] = jnp.sum(acc, axis=0, keepdims=True)
    sq_ref[0] = jnp.sum(acc * acc, axis=0, keepdims=True)


def _bn_act_kernel(conv_ref, scale_ref, shift_ref, out_ref):
    # conv_ref/out_ref: (1, 2H, 2W*Cout) f32 (aliased);  scale/shift: (1, 2W*Cout) f32
    v = conv_ref[0] * scale_ref[...] + shift_ref[...]
    out_ref[0] = jnp.where(v >= 0, v, LEAKY_SLOPE * v)


@jax.jit
def _forward_impl(x3, uh_s, c_s, gamma, beta):
    N, H, WCp = x3.shape
    H2 = uh_s.shape[1]
    C2 = c_s.shape[2]                    # 2W * Cout
    Cout = gamma.shape[0]
    W2 = C2 // Cout

    conv3, sums, sqs = pl.pallas_call(
        _conv_stats_kernel,
        grid=(N,),
        out_shape=(jax.ShapeDtypeStruct((N, H2, C2), jnp.float32),
                   jax.ShapeDtypeStruct((N, 1, C2), jnp.float32),
                   jax.ShapeDtypeStruct((N, 1, C2), jnp.float32)),
        in_specs=[pl.BlockSpec((1, H, WCp), lambda n: (n, 0, 0)),
                  pl.BlockSpec((3, H2, H), lambda n: (0, 0, 0)),
                  pl.BlockSpec((3, WCp, C2), lambda n: (0, 0, 0))],
        out_specs=(pl.BlockSpec((1, H2, C2), lambda n: (n, 0, 0)),
                   pl.BlockSpec((1, 1, C2), lambda n: (n, 0, 0)),
                   pl.BlockSpec((1, 1, C2), lambda n: (n, 0, 0))),
        compiler_params=pltpu.CompilerParams(dimension_semantics=("parallel",)),
    )(x3, uh_s, c_s)

    # Tiny cross-sample BN reduction + scale/shift precompute (plain JAX glue).
    count = N * H2 * W2
    ch_sum = sums.reshape(N * W2, Cout).sum(axis=0)
    ch_sq = sqs.reshape(N * W2, Cout).sum(axis=0)
    mean = ch_sum / count
    # NOTE: E[x^2]-E[x]^2 in f32 — adequate at this tolerance; Welford if reused
    # with large-mean activations.
    var = ch_sq / count - mean * mean
    inv_std = jax.lax.rsqrt(var + BN_EPS)
    scale = gamma * inv_std
    shift = beta - mean * scale
    scale_p = jnp.tile(scale, W2)[None, :]        # (1, 2W*Cout), channel-interleaved
    shift_p = jnp.tile(shift, W2)[None, :]

    out3 = pl.pallas_call(
        _bn_act_kernel,
        grid=(N,),
        out_shape=jax.ShapeDtypeStruct((N, H2, C2), jnp.float32),
        in_specs=[pl.BlockSpec((1, H2, C2), lambda n: (n, 0, 0)),
                  pl.BlockSpec((1, C2), lambda n: (0, 0)),
                  pl.BlockSpec((1, C2), lambda n: (0, 0))],
        out_specs=pl.BlockSpec((1, H2, C2), lambda n: (n, 0, 0)),
        input_output_aliases={0: 0},              # apply BN in place over conv buffer
        compiler_params=pltpu.CompilerParams(dimension_semantics=("parallel",)),
    )(conv3, scale_p, shift_p)
    return out3


def conv_block_forward(x, weight, bias, gamma, beta):
    """x: (N, Cin, H, W) float32 NCHW -> (N, Cout, 2H, 2W) float32 NCHW."""
    del bias  # cancels exactly under training-mode BatchNorm (per-channel mean sub)
    N, Cin, H, W = map(int, x.shape)
    Cout = int(weight.shape[0])
    H2, W2 = 2 * H, 2 * W

    # Pad input channels so the packed lane dim W*Cp is a multiple of 128 (lane-dense
    # vregs, aligned conv contraction) — only if the padding is cheap.
    need = 128 // math.gcd(W, 128)
    Cp = -(-Cin // need) * need
    if Cp > max(2 * Cin, Cin + 8):
        Cp = Cin

    uh_s, c_s = _build_matrices(weight, H, W, Cin, Cp, Cout)

    x_nhwc = jnp.transpose(jnp.asarray(x, jnp.float32), (0, 2, 3, 1))
    if Cp != Cin:
        x_nhwc = jnp.pad(x_nhwc, ((0, 0), (0, 0), (0, 0), (0, Cp - Cin)))
    x3 = x_nhwc.reshape(N, H, W * Cp).astype(jnp.bfloat16)

    out3 = _forward_impl(x3,
                         jnp.asarray(uh_s, jnp.bfloat16),
                         jnp.asarray(c_s, jnp.bfloat16),
                         jnp.asarray(gamma, jnp.float32),
                         jnp.asarray(beta, jnp.float32))
    return out3.reshape(N, H2, W2, Cout).transpose(0, 3, 1, 2)


def reference(x, weight, bias, gamma, beta):
    """Pure-JAX reference of ConvBlock.forward (training-mode BatchNorm, with bias)."""
    N, Cin, H, W = x.shape
    Uh = jnp.asarray(_bilinear_upsample_matrix(H))
    Uw = jnp.asarray(_bilinear_upsample_matrix(W))
    hp = jax.lax.Precision.HIGHEST
    up = jnp.einsum('ph,nchw->ncpw', Uh, x, precision=hp)
    up = jnp.einsum('qw,ncpw->ncpq', Uw, up, precision=hp)
    conv = jax.lax.conv_general_dilated(
        up, weight, (1, 1), ((1, 1), (1, 1)),
        dimension_numbers=('NCHW', 'OIHW', 'NCHW'), precision=hp)
    conv = conv + bias[None, :, None, None]
    mean = conv.mean(axis=(0, 2, 3), keepdims=True)
    var = ((conv - mean) ** 2).mean(axis=(0, 2, 3), keepdims=True)
    y = ((conv - mean) / jnp.sqrt(var + BN_EPS)
         * gamma[None, :, None, None] + beta[None, :, None, None])
    return jnp.where(y >= 0, y, LEAKY_SLOPE * y)


if __name__ == "__main__":
    key = jax.random.PRNGKey(0)
    k_x, k_w, k_b = jax.random.split(key, 3)

    N, Cin, Cout, H, W = 2, 4, 8, 16, 16
    x = jax.random.normal(k_x, (N, Cin, H, W), jnp.float32)
    weight = jax.random.normal(k_w, (Cout, Cin, 3, 3), jnp.float32) * 0.2
    bias = jax.random.normal(k_b, (Cout,), jnp.float32) * 0.1
    gamma = jnp.ones((Cout,), jnp.float32)   # PyTorch BatchNorm2d default init
    beta = jnp.zeros((Cout,), jnp.float32)

    out = conv_block_forward(x, weight, bias, gamma, beta)
    out = jax.block_until_ready(out)

    ref = reference(x, weight, bias, gamma, beta)
    err = float(jnp.max(jnp.abs(out - ref)))
    assert out.shape == (N, Cout, 2 * H, 2 * W), out.shape
    # bf16 MXU operands (f32 accumulation) -> slightly wider tolerance than pure f32.
    assert err < 2e-2, f"max abs diff too large: {err}"
    print("KERNEL_OK")
</pallas_src>

<mosaic_0001>
module attributes {stable_mosaic.version = 11 : i64} {
  func.func @_conv_stats_kernel(%arg0: i32, %arg1: memref<1x16x128xbf16, #tpu.memory_space<vmem>>, %arg2: memref<3x32x16xbf16, #tpu.memory_space<vmem>>, %arg3: memref<3x128x256xbf16, #tpu.memory_space<vmem>>, %arg4: memref<1x32x256xf32, #tpu.memory_space<vmem>>, %arg5: memref<1x1x256xf32, #tpu.memory_space<vmem>>, %arg6: memref<1x1x256xf32, #tpu.memory_space<vmem>>) attributes {dimension_semantics = [#tpu.dimension_semantics<parallel>], iteration_bounds = array<i64: 2>, scalar_prefetch = 0 : i64, scratch_operands = 0 : i64, tpu.core_type = #tpu.core_type<tc>, window_params = [{transform_indices = @transform_0, window_bounds = array<i64: 1, 16, 128>}, {pipeline_mode = #tpu.pipeline_mode<synchronous>, transform_indices = @transform_1, window_bounds = array<i64: 3, 32, 16>}, {pipeline_mode = #tpu.pipeline_mode<synchronous>, transform_indices = @transform_2, window_bounds = array<i64: 3, 128, 256>}, {transform_indices = @transform_3, window_bounds = array<i64: 1, 32, 256>}, {transform_indices = @transform_4, window_bounds = array<i64: 1, 1, 256>}, {transform_indices = @transform_5, window_bounds = array<i64: 1, 1, 256>}]} {
    %c0 = arith.constant 0 : index
    %c0_0 = arith.constant 0 : index
    %c0_1 = arith.constant 0 : index
    %0 = vector.load %arg1[%c0, %c0_0, %c0_1] : memref<1x16x128xbf16, #tpu.memory_space<vmem>>, vector<1x16x128xbf16>
    %1 = vector.shape_cast %0 : vector<1x16x128xbf16> to vector<16x128xbf16>
    %cst = arith.constant 0.000000e+00 : f32
    %2 = vector.broadcast %cst : f32 to vector<32x256xf32>
    %c0_2 = arith.constant 0 : index
    %c0_3 = arith.constant 0 : index
    %c0_4 = arith.constant 0 : index
    %3 = vector.load %arg2[%c0_2, %c0_3, %c0_4] : memref<3x32x16xbf16, #tpu.memory_space<vmem>>, vector<1x32x16xbf16>
    %4 = vector.shape_cast %3 : vector<1x32x16xbf16> to vector<32x16xbf16>
    %cst_5 = arith.constant dense<0.000000e+00> : vector<32x128xf32>
    %5 = tpu.matmul %4, %1, %cst_5 {dimension_numbers = #tpu.dot_dimension_numbers<[1], [0], [0], [1], [0, 0, 1, 1], [], []>} : vector<32x16xbf16>, vector<16x128xbf16>, vector<32x128xf32> -> vector<32x128xf32>
    %6 = arith.truncf %5 : vector<32x128xf32> to vector<32x128xbf16>
    %c0_6 = arith.constant 0 : index
    %c0_7 = arith.constant 0 : index
    %c0_8 = arith.constant 0 : index
    %7 = vector.load %arg3[%c0_6, %c0_7, %c0_8] : memref<3x128x256xbf16, #tpu.memory_space<vmem>>, vector<1x128x256xbf16>
    %8 = vector.shape_cast %7 : vector<1x128x256xbf16> to vector<128x256xbf16>
    %cst_9 = arith.constant dense<0.000000e+00> : vector<32x256xf32>
    %9 = tpu.matmul %6, %8, %cst_9 {dimension_numbers = #tpu.dot_dimension_numbers<[1], [0], [0], [1], [0, 0, 1, 1], [], []>} : vector<32x128xbf16>, vector<128x256xbf16>, vector<32x256xf32> -> vector<32x256xf32>
    %10 = arith.addf %2, %9 : vector<32x256xf32>
    %c1 = arith.constant 1 : index
    %c0_10 = arith.constant 0 : index
    %c0_11 = arith.constant 0 : index
    %11 = vector.load %arg2[%c1, %c0_10, %c0_11] : memref<3x32x16xbf16, #tpu.memory_space<vmem>>, vector<1x32x16xbf16>
    %12 = vector.shape_cast %11 : vector<1x32x16xbf16> to vector<32x16xbf16>
    %cst_12 = arith.constant dense<0.000000e+00> : vector<32x128xf32>
    %13 = tpu.matmul %12, %1, %cst_12 {dimension_numbers = #tpu.dot_dimension_numbers<[1], [0], [0], [1], [0, 0, 1, 1], [], []>} : vector<32x16xbf16>, vector<16x128xbf16>, vector<32x128xf32> -> vector<32x128xf32>
    %14 = arith.truncf %13 : vector<32x128xf32> to vector<32x128xbf16>
    %c1_13 = arith.constant 1 : index
    %c0_14 = arith.constant 0 : index
    %c0_15 = arith.constant 0 : index
    %15 = vector.load %arg3[%c1_13, %c0_14, %c0_15] : memref<3x128x256xbf16, #tpu.memory_space<vmem>>, vector<1x128x256xbf16>
    %16 = vector.shape_cast %15 : vector<1x128x256xbf16> to vector<128x256xbf16>
    %cst_16 = arith.constant dense<0.000000e+00> : vector<32x256xf32>
    %17 = tpu.matmul %14, %16, %cst_16 {dimension_numbers = #tpu.dot_dimension_numbers<[1], [0], [0], [1], [0, 0, 1, 1], [], []>} : vector<32x128xbf16>, vector<128x256xbf16>, vector<32x256xf32> -> vector<32x256xf32>
    %18 = arith.addf %10, %17 : vector<32x256xf32>
    %c2 = arith.constant 2 : index
    %c0_17 = arith.constant 0 : index
    %c0_18 = arith.constant 0 : index
    %19 = vector.load %arg2[%c2, %c0_17, %c0_18] : memref<3x32x16xbf16, #tpu.memory_space<vmem>>, vector<1x32x16xbf16>
    %20 = vector.shape_cast %19 : vector<1x32x16xbf16> to vector<32x16xbf16>
    %cst_19 = arith.constant dense<0.000000e+00> : vector<32x128xf32>
    %21 = tpu.matmul %20, %1, %cst_19 {dimension_numbers = #tpu.dot_dimension_numbers<[1], [0], [0], [1], [0, 0, 1, 1], [], []>} : vector<32x16xbf16>, vector<16x128xbf16>, vector<32x128xf32> -> vector<32x128xf32>
    %22 = arith.truncf %21 : vector<32x128xf32> to vector<32x128xbf16>
    %c2_20 = arith.constant 2 : index
    %c0_21 = arith.constant 0 : index
    %c0_22 = arith.constant 0 : index
    %23 = vector.load %arg3[%c2_20, %c0_21, %c0_22] : memref<3x128x256xbf16, #tpu.memory_space<vmem>>, vector<1x128x256xbf16>
    %24 = vector.shape_cast %23 : vector<1x128x256xbf16> to vector<128x256xbf16>
    %cst_23 = arith.constant dense<0.000000e+00> : vector<32x256xf32>
    %25 = tpu.matmul %22, %24, %cst_23 {dimension_numbers = #tpu.dot_dimension_numbers<[1], [0], [0], [1], [0, 0, 1, 1], [], []>} : vector<32x128xbf16>, vector<128x256xbf16>, vector<32x256xf32> -> vector<32x256xf32>
    %26 = arith.addf %18, %25 : vector<32x256xf32>
    %c0_24 = arith.constant 0 : index
    %c0_25 = arith.constant 0 : index
    %c0_26 = arith.constant 0 : index
    %27 = vector.load %arg4[%c0_24, %c0_25, %c0_26] : memref<1x32x256xf32, #tpu.memory_space<vmem>>, vector<1x32x256xf32>
    %28 = vector.shape_cast %27 : vector<1x32x256xf32> to vector<32x256xf32>
    %29 = vector.shape_cast %26 : vector<32x256xf32> to vector<1x32x256xf32>
    tpu.vector_store %arg4[%c0_24, %c0_25, %c0_26], %29 {strides = array<i32>} : memref<1x32x256xf32, #tpu.memory_space<vmem>>, vector<1x32x256xf32>,
    %cst_27 = arith.constant dense<0.000000e+00> : vector<256xf32>
    %30 = vector.multi_reduction <add>, %26, %cst_27 [0] : vector<32x256xf32> to vector<256xf32>
    %31 = vector.shape_cast %30 : vector<256xf32> to vector<1x256xf32>
    %c0_28 = arith.constant 0 : index
    %c0_29 = arith.constant 0 : index
    %c0_30 = arith.constant 0 : index
    %32 = vector.load %arg5[%c0_28, %c0_29, %c0_30] : memref<1x1x256xf32, #tpu.memory_space<vmem>>, vector<1x1x256xf32>
    %33 = vector.shape_cast %32 : vector<1x1x256xf32> to vector<1x256xf32>
    %34 = vector.shape_cast %31 : vector<1x256xf32> to vector<1x1x256xf32>
    tpu.vector_store %arg5[%c0_28, %c0_29, %c0_30], %34 {strides = array<i32>} : memref<1x1x256xf32, #tpu.memory_space<vmem>>, vector<1x1x256xf32>,
    %35 = arith.mulf %26, %26 : vector<32x256xf32>
    %cst_31 = arith.constant dense<0.000000e+00> : vector<256xf32>
    %36 = vector.multi_reduction <add>, %35, %cst_31 [0] : vector<32x256xf32> to vector<256xf32>
    %37 = vector.shape_cast %36 : vector<256xf32> to vector<1x256xf32>
    %c0_32 = arith.constant 0 : index
    %c0_33 = arith.constant 0 : index
    %c0_34 = arith.constant 0 : index
    %38 = vector.load %arg6[%c0_32, %c0_33, %c0_34] : memref<1x1x256xf32, #tpu.memory_space<vmem>>, vector<1x1x256xf32>
    %39 = vector.shape_cast %38 : vector<1x1x256xf32> to vector<1x256xf32>
    %40 = vector.shape_cast %37 : vector<1x256xf32> to vector<1x1x256xf32>
    tpu.vector_store %arg6[%c0_32, %c0_33, %c0_34], %40 {strides = array<i32>} : memref<1x1x256xf32, #tpu.memory_space<vmem>>, vector<1x1x256xf32>,
    return
  }
  func.func @transform_0(%arg0: i32) -> (i32, i32, i32) {
    %c0_i32 = arith.constant 0 : i32
    %c0_i32_0 = arith.constant 0 : i32
    %c0_i32_1 = arith.constant 0 : i32
    return %arg0, %c0_i32, %c0_i32_0 : i32, i32, i32
  }
  func.func @transform_1(%arg0: i32) -> (i32, i32, i32) {
    %c0_i32 = arith.constant 0 : i32
    %c0_i32_0 = arith.constant 0 : i32
    %c0_i32_1 = arith.constant 0 : i32
    %c0_i32_2 = arith.constant 0 : i32
    return %c0_i32, %c0_i32_0, %c0_i32_1 : i32, i32, i32
  }
  func.func @transform_2(%arg0: i32) -> (i32, i32, i32) {
    %c0_i32 = arith.constant 0 : i32
    %c0_i32_0 = arith.constant 0 : i32
    %c0_i32_1 = arith.constant 0 : i32
    %c0_i32_2 = arith.constant 0 : i32
    return %c0_i32, %c0_i32_0, %c0_i32_1 : i32, i32, i32
  }
  func.func @transform_3(%arg0: i32) -> (i32, i32, i32) {
    %c0_i32 = arith.constant 0 : i32
    %c0_i32_0 = arith.constant 0 : i32
    %c0_i32_1 = arith.constant 0 : i32
    return %arg0, %c0_i32, %c0_i32_0 : i32, i32, i32
  }
  func.func @transform_4(%arg0: i32) -> (i32, i32, i32) {
    %c0_i32 = arith.constant 0 : i32
    %c0_i32_0 = arith.constant 0 : i32
    %c0_i32_1 = arith.constant 0 : i32
    return %arg0, %c0_i32, %c0_i32_0 : i32, i32, i32
  }
  func.func @transform_5(%arg0: i32) -> (i32, i32, i32) {
    %c0_i32 = arith.constant 0 : i32
    %c0_i32_0 = arith.constant 0 : i32
    %c0_i32_1 = arith.constant 0 : i32
    return %arg0, %c0_i32, %c0_i32_0 : i32, i32, i32
  }
}

module attributes {stable_mosaic.version = 11 : i64} {
  func.func @_bn_act_kernel(%arg0: i32, %arg1: memref<1x32x256xf32, #tpu.memory_space<vmem>>, %arg2: memref<1x256xf32, #tpu.memory_space<vmem>>, %arg3: memref<1x256xf32, #tpu.memory_space<vmem>>, %arg4: memref<1x32x256xf32, #tpu.memory_space<vmem>>) attributes {dimension_semantics = [#tpu.dimension_semantics<parallel>], iteration_bounds = array<i64: 2>, scalar_prefetch = 0 : i64, scratch_operands = 0 : i64, tpu.core_type = #tpu.core_type<tc>, window_params = [{transform_indices = @transform_0, window_bounds = array<i64: 1, 32, 256>}, {pipeline_mode = #tpu.pipeline_mode<synchronous>, transform_indices = @transform_1, window_bounds = array<i64: 1, 256>}, {pipeline_mode = #tpu.pipeline_mode<synchronous>, transform_indices = @transform_2, window_bounds = array<i64: 1, 256>}, {transform_indices = @transform_3, window_bounds = array<i64: 1, 32, 256>}]} {
    %c0 = arith.constant 0 : index
    %c0_0 = arith.constant 0 : index
    %c0_1 = arith.constant 0 : index
    %0 = vector.load %arg1[%c0, %c0_0, %c0_1] : memref<1x32x256xf32, #tpu.memory_space<vmem>>, vector<1x32x256xf32>
    %1 = vector.shape_cast %0 : vector<1x32x256xf32> to vector<32x256xf32>
    %c0_2 = arith.constant 0 : index
    %c0_3 = arith.constant 0 : index
    %2 = vector.load %arg2[%c0_2, %c0_3] : memref<1x256xf32, #tpu.memory_space<vmem>>, vector<1x256xf32>
    %3 = vector.broadcast %2 : vector<1x256xf32> to vector<32x256xf32>
    %4 = arith.mulf %1, %3 : vector<32x256xf32>
    %c0_4 = arith.constant 0 : index
    %c0_5 = arith.constant 0 : index
    %5 = vector.load %arg3[%c0_4, %c0_5] : memref<1x256xf32, #tpu.memory_space<vmem>>, vector<1x256xf32>
    %6 = vector.broadcast %5 : vector<1x256xf32> to vector<32x256xf32>
    %7 = arith.addf %4, %6 : vector<32x256xf32>
    %cst = arith.constant 0.000000e+00 : f32
    %8 = vector.broadcast %cst : f32 to vector<32x256xf32>
    %9 = arith.cmpf oge, %7, %8 : vector<32x256xf32>
    %cst_6 = arith.constant 2.000000e-02 : f32
    %10 = vector.broadcast %cst_6 : f32 to vector<32x256xf32>
    %11 = arith.mulf %10, %7 : vector<32x256xf32>
    %12 = arith.select %9, %7, %11 : vector<32x256xi1>, vector<32x256xf32>
    %c0_7 = arith.constant 0 : index
    %c0_8 = arith.constant 0 : index
    %c0_9 = arith.constant 0 : index
    %13 = vector.load %arg4[%c0_7, %c0_8, %c0_9] : memref<1x32x256xf32, #tpu.memory_space<vmem>>, vector<1x32x256xf32>
    %14 = vector.shape_cast %13 : vector<1x32x256xf32> to vector<32x256xf32>
    %15 = vector.shape_cast %12 : vector<32x256xf32> to vector<1x32x256xf32>
    tpu.vector_store %arg4[%c0_7, %c0_8, %c0_9], %15 {strides = array<i32>} : memref<1x32x256xf32, #tpu.memory_space<vmem>>, vector<1x32x256xf32>,
    return
  }
  func.func @transform_0(%arg0: i32) -> (i32, i32, i32) {
    %c0_i32 = arith.constant 0 : i32
    %c0_i32_0 = arith.constant 0 : i32
    %c0_i32_1 = arith.constant 0 : i32
    return %arg0, %c0_i32, %c0_i32_0 : i32, i32, i32
  }
  func.func @transform_1(%arg0: i32) -> (i32, i32) {
    %c0_i32 = arith.constant 0 : i32
    %c0_i32_0 = arith.constant 0 : i32
    %c0_i32_1 = arith.constant 0 : i32
    return %c0_i32, %c0_i32_0 : i32, i32
  }
  func.func @transform_2(%arg0: i32) -> (i32, i32) {
    %c0_i32 = arith.constant 0 : i32
    %c0_i32_0 = arith.constant 0 : i32
    %c0_i32_1 = arith.constant 0 : i32
    return %c0_i32, %c0_i32_0 : i32, i32
  }
  func.func @transform_3(%arg0: i32) -> (i32, i32, i32) {
    %c0_i32 = arith.constant 0 : i32
    %c0_i32_0 = arith.constant 0 : i32
    %c0_i32_1 = arith.constant 0 : i32
    return %arg0, %c0_i32, %c0_i32_0 : i32, i32, i32
  }
}

</mosaic_0001>

<llo_original>
// kernel: tile.18
$region0: #{tile.18}
  #allocation0 [shape = 's32[1]{0}', space=sflag, size = 0x4, scoped, tag = 'scoped memory for tile.18']
  %s0 = inlined_call_operand.vmem [shape: f32[8], index: 0, kind: input, shape index: {}]
  %s1 = inlined_call_operand.vmem [shape: f32[32,8], index: 1, kind: output, shape index: {}]
  // Predicated region
  $region2: #{tile.18} parent=0 // pred_check
    _
  $region3: #{tile.18} parent=0 // pred_check_branch
    %3 = sbr.rel (0) target = $region5
  $region4: #{tile.18} parent=0 // pred_region
    _
  $region5: #{tile.18} parent=0 // pred_fallthru
    _
  %v4 = vld [vmem:[%s0] ss:$0 sm:$0xff]
  %5 = vst [vmem:[%s1] sm:$0xff] %v4
  %s6 = scalar_lea.vmem %s1, 8
  %7 = vst [vmem:[%s6] sm:$0xff] %v4
  %s8 = scalar_lea.vmem %s1, 16
  %9 = vst [vmem:[%s8] sm:$0xff] %v4
  %s10 = scalar_lea.vmem %s1, 24
  %11 = vst [vmem:[%s10] sm:$0xff] %v4

// kernel: tile.19
$region0: #{tile.19}
  %s0 = inlined_call_operand.vmem [shape: f32[32,8], index: 0, kind: input, shape index: {}]
  %s1 = inlined_call_operand.vmem [shape: f32[1,256], index: 1, kind: output, shape index: {}]
  $region1: #{tile.19} parent=0
    #allocation0 [shape = 'u8[8192]{0}', space=vmem, size = 0x2000, scoped, tag = 'scoped mem for output reshape']
    %s2 = smov 3
    %v3 = vld [vmem:[%s0] ss:$16 sm:%s2]
    %vm4 = vcmask 64512
    %5 = vst.msk [vmem:[#allocation0] ss:$8 sm:$0x3] %vm4, %v3
    %s6 = scalar_lea.vmem %s0, 15
    %s7 = smov 3
    %v8 = vld [vmem:[%s6] ss:$16 sm:%s7]
    %9 = vrot.lane.b32.xlu0 %v8, 120
    %v10 = vpop.permute.xlu0 %9
    %vm11 = vcmask 1048512
    %12 = vst.msk [vmem:[#allocation0] ss:$8 sm:$0x3] %vm11, %v10
    %s13 = scalar_lea.vmem %s0, 14
    %s14 = smov 3
    %v15 = vld [vmem:[%s13] ss:$16 sm:%s14]
    %16 = vrot.lane.b32.xlu0 %v15, 112
    %v17 = vpop.permute.xlu0 %16
    %vm18 = vcmask 982912
    %19 = vst.msk [vmem:[#allocation0] ss:$8 sm:$0x3] %vm18, %v17
    %s20 = scalar_lea.vmem %s0, 13
    %s21 = smov 3
    %v22 = vld [vmem:[%s20] ss:$16 sm:%s21]
    %23 = vrot.lane.b32.xlu0 %v22, 104
    %v24 = vpop.permute.xlu0 %23
    %vm25 = vcmask 917312
    %26 = vst.msk [vmem:[#allocation0] ss:$8 sm:$0x3] %vm25, %v24
    %s27 = scalar_lea.vmem %s0, 12
    %s28 = smov 3
    %v29 = vld [vmem:[%s27] ss:$16 sm:%s28]
    %30 = vrot.lane.b32.xlu0 %v29, 96
    %v31 = vpop.permute.xlu0 %30
    %vm32 = vcmask 851712
    %33 = vst.msk [vmem:[#allocation0] ss:$8 sm:$0x3] %vm32, %v31
    %s34 = scalar_lea.vmem %s0, 11
    %s35 = smov 3
    %v36 = vld [vmem:[%s34] ss:$16 sm:%s35]
    %37 = vrot.lane.b32.xlu0 %v36, 88
    %v38 = vpop.permute.xlu0 %37
    %vm39 = vcmask 786112
    %40 = vst.msk [vmem:[#allocation0] ss:$8 sm:$0x3] %vm39, %v38
    %s41 = scalar_lea.vmem %s0, 10
    %s42 = smov 3
    %v43 = vld [vmem:[%s41] ss:$16 sm:%s42]
    %44 = vrot.lane.b32.xlu0 %v43, 80
    %v45 = vpop.permute.xlu0 %44
    %vm46 = vcmask 720512
    %47 = vst.msk [vmem:[#allocation0] ss:$8 sm:$0x3] %vm46, %v45
    %s48 = scalar_lea.vmem %s0, 9
    %s49 = smov 3
    %v50 = vld [vmem:[%s48] ss:$16 sm:%s49]
    %51 = vrot.lane.b32.xlu0 %v50, 72
    %v52 = vpop.permute.xlu0 %51
    %vm53 = vcmask 654912
    %54 = vst.msk [vmem:[#allocation0] ss:$8 sm:$0x3] %vm53, %v52
    %s55 = scalar_lea.vmem %s0, 8
    %s56 = smov 3
    %v57 = vld [vmem:[%s55] ss:$16 sm:%s56]
    %58 = vrot.lane.b32.xlu0 %v57, 64
    %v59 = vpop.permute.xlu0 %58
    %vm60 = vcmask 589312
    %61 = vst.msk [vmem:[#allocation0] ss:$8 sm:$0x3] %vm60, %v59
    %s62 = scalar_lea.vmem %s0, 7
    %s63 = smov 3
    %v64 = vld [vmem:[%s62] ss:$16 sm:%s63]
    %65 = vrot.lane.b32.xlu0 %v64, 56
    %v66 = vpop.permute.xlu0 %65
    %vm67 = vcmask 523712
    %68 = vst.msk [vmem:[#allocation0] ss:$8 sm:$0x3] %vm67, %v66
    %s69 = scalar_lea.vmem %s0, 6
    %s70 = smov 3
    %v71 = vld [vmem:[%s69] ss:$16 sm:%s70]
    %72 = vrot.lane.b32.xlu0 %v71, 48
    %v73 = vpop.permute.xlu0 %72
    %vm74 = vcmask 458112
    %75 = vst.msk [vmem:[#allocation0] ss:$8 sm:$0x3] %vm74, %v73
    %s76 = scalar_lea.vmem %s0, 5
    %s77 = smov 3
    %v78 = vld [vmem:[%s76] ss:$16 sm:%s77]
    %79 = vrot.lane.b32.xlu0 %v78, 40
    %v80 = vpop.permute.xlu0 %79
    %vm81 = vcmask 392512
    %82 = vst.msk [vmem:[#allocation0] ss:$8 sm:$0x3] %vm81, %v80
    %s83 = scalar_lea.vmem %s0, 4
    %s84 = smov 3
    %v85 = vld [vmem:[%s83] ss:$16 sm:%s84]
    %86 = vrot.lane.b32.xlu0 %v85, 32
    %v87 = vpop.permute.xlu0 %86
    %vm88 = vcmask 326912
    %89 = vst.msk [vmem:[#allocation0] ss:$8 sm:$0x3] %vm88, %v87
    %s90 = scalar_lea.vmem %s0, 3
    %s91 = smov 3
    %v92 = vld [vmem:[%s90] ss:$16 sm:%s91]
    %93 = vrot.lane.b32.xlu0 %v92, 24
    %v94 = vpop.permute.xlu0 %93
    %vm95 = vcmask 261312
    %96 = vst.msk [vmem:[#allocation0] ss:$8 sm:$0x3] %vm95, %v94
    %s97 = scalar_lea.vmem %s0, 2
    %s98 = smov 3
    %v99 = vld [vmem:[%s97] ss:$16 sm:%s98]
    %100 = vrot.lane.b32.xlu0 %v99, 16
    %v101 = vpop.permute.xlu0 %100
    %vm102 = vcmask 195712
    %103 = vst.msk [vmem:[#allocation0] ss:$8 sm:$0x3] %vm102, %v101
    %s104 = scalar_lea.vmem %s0, 1
    %s105 = smov 3
    %v106 = vld [vmem:[%s104] ss:$16 sm:%s105]
    %107 = vrot.lane.b32.xlu0 %v106, 8
    %v108 = vpop.permute.xlu0 %107
    %vm109 = vcmask 130112
    %110 = vst.msk [vmem:[#allocation0] ss:$8 sm:$0x3] %vm109, %v108
    %s112 = sshllo.u32 0, 1
    %v114 = vld [vmem:[#allocation0] sm:%s112]
    %s115 = sshllo.u32 0, 1
    %116 = vst [vmem:[%s1] sm:%s115] %v114
    %s117 = scalar_lea.vmem [#allocation0], 8
    %v118 = vld [vmem:[%s117] sm:%s112]
    %s119 = sshllo.u32 0, 1
    %s120 = scalar_lea.vmem %s1, 1
    %121 = vst [vmem:[%s120] sm:%s119] %v118

// kernel: _forward_impl.3
$region0: #{_forward_impl.3}
  #allocation0 [shape = 'u32[]', space=smem, size = 0x4, offset = 0x4, fixed_abs, tag = 'smem constant byte address 0x4 - core index']
  #allocation1 [shape = 'u32[144,128]{1,0:T(1,128)}', space=vmem, size = 0x12000, scoped, tag = 'internal scratch']
  %s0 = inlined_call_operand.hbm [shape: f32[2,32,256], index: 0, kind: input, shape index: {}, may-alias: {0,3}]
  %s1 = inlined_call_operand.vmem [shape: f32[1,256], index: 1, kind: input, shape index: {}]
  %s2 = inlined_call_operand.vmem [shape: f32[1,256], index: 2, kind: input, shape index: {}]
  %s3 = inlined_call_operand.hbm [shape: f32[2,32,256], index: 3, kind: output, shape index: {}, may-alias: {0,3}]
  %s4 = sld [smem:[#allocation0]]
  $region49: #{_forward_impl.3} parent=0
    _
  %s6 = ssub.s32 1, %s4
  %s7 = scalar_select 0, %s6, %s4
  $region1: #{_forward_impl.3} parent=0
    #allocation2 [shape = 'u8[65536]{0}', space=vmem, size = 0x10000, scoped, tag = 'input window, operand 0']
    #allocation3 [shape = 's32[2]{0}', space=sflag, size = 0x8, scoped, tag = 'scoped memory for _forward_impl.3']
    #allocation4 [shape = 's32[2]{0}', space=sflag, size = 0x8, scoped, tag = 'scoped memory for _forward_impl.3']
    #allocation5 [shape = 'u8[65536]{0}', space=vmem, size = 0x10000, scoped, tag = 'output window, operand 0']
    %8 = vsyncpa [#allocation3], 0
    %s9 = scalar_lea.sflag [#allocation3], 1
    %10 = vsyncpa %s9, 0
    %11 = vsyncpa [#allocation4], 0
    %s12 = scalar_lea.sflag [#allocation4], 1
    %13 = vsyncpa %s12, 0
    loop: start=0, step=1, limit=4
    $region2: #{_forward_impl.3} parent=1 // loop_pre_header
      _
    $region3: #{_forward_impl.3} parent=1 // loop_header
      %s15 = sphi 0, %s19
      %p16 = scmp.ge.s32.totalorder %s15, 4
      %s25 = sphi 0, %s27
      %s28 = sphi 0, %s25
      %s29 = sphi 0, %s28
      %s45 = sphi 0, %s29
      %s49 = sphi 0, %s49
      %s51 = sphi 0, %s49
      %s52 = sphi 0, %s51
      %s66 = sphi 0, %s52
      %s70 = sphi 0, %s70
      %s72 = sphi 0, %s70
      %s73 = sphi 0, %s72
      %s87 = sphi 0, %s73
      %s93 = sphi 0, %s95
      %s96 = sphi 0, %s93
      %s97 = sphi 0, %s96
      %s113 = sphi 0, %s97
    $region4: #{_forward_impl.3} parent=1 // loop_header_branch
      %18 = sbr.rel (%p16) target = $region8
    $region5: #{_forward_impl.3} parent=1 // loop_body
      %s20 = ssub.s32 %s15, 1
      %s21 = ssub.s32 %s15, 2
      %s22 = sadd.s32 %s15, 1
      %s23 = ssub.s32 %s15, %s22
      %p24 = scmp.eq.s32.totalorder %s23, 0
      %s26 = sadd.s32 %s25, 1
      %s27 = scalar_select %p24, %s25, %s26
      %p30 = pneg %p24
      %p31 = scmp.eq.s32.totalorder %s15, 1
      %p32 = por %p30, %p31
      %p33 = scmp.ne.s32.totalorder %s25, %s28
      %p34 = scmp.eq.s32.totalorder %s15, 0
      %p35 = por %p33, %p34
      %p36 = scmp.ne.s32.totalorder %s25, %s28
      %p37 = scmp.eq.s32.totalorder %s20, 1
      %p38 = por %p36, %p37
      %p39 = scmp.ne.s32.totalorder %s28, %s29
      %p40 = scmp.eq.s32.totalorder %s20, 0
      %p41 = por %p39, %p40
      %p42 = scmp.ne.s32.totalorder %s28, %s29
      %p43 = scmp.eq.s32.totalorder %s21, 1
      %p44 = por %p42, %p43
      %p46 = scmp.ne.s32.totalorder %s29, %s45
      %p47 = scmp.eq.s32.totalorder %s21, 0
      %p48 = por %p46, %p47
      %s50 = sadd.s32 %s49, 1
      %p53 = scmp.eq.s32.totalorder %s15, 1
      %p54 = scmp.ne.s32.totalorder %s49, %s51
      %p55 = scmp.eq.s32.totalorder %s15, 0
      %p56 = por %p54, %p55
      %p57 = scmp.ne.s32.totalorder %s49, %s51
      %p58 = scmp.eq.s32.totalorder %s20, 1
      %p59 = por %p57, %p58
      %p60 = scmp.ne.s32.totalorder %s51, %s52
      %p61 = scmp.eq.s32.totalorder %s20, 0
      %p62 = por %p60, %p61
      %p63 = scmp.ne.s32.totalorder %s51, %s52
      %p64 = scmp.eq.s32.totalorder %s21, 1
      %p65 = por %p63, %p64
      %p67 = scmp.ne.s32.totalorder %s52, %s66
      %p68 = scmp.eq.s32.totalorder %s21, 0
      %p69 = por %p67, %p68
      %s71 = sadd.s32 %s70, 1
      %p74 = scmp.eq.s32.totalorder %s15, 1
      %p75 = scmp.ne.s32.totalorder %s70, %s72
      %p76 = scmp.eq.s32.totalorder %s15, 0
      %p77 = por %p75, %p76
      %p78 = scmp.ne.s32.totalorder %s70, %s72
      %p79 = scmp.eq.s32.totalorder %s20, 1
      %p80 = por %p78, %p79
      %p81 = scmp.ne.s32.totalorder %s72, %s73
      %p82 = scmp.eq.s32.totalorder %s20, 0
      %p83 = por %p81, %p82
      %p84 = scmp.ne.s32.totalorder %s72, %s73
      %p85 = scmp.eq.s32.totalorder %s21, 1
      %p86 = por %p84, %p85
      %p88 = scmp.ne.s32.totalorder %s73, %s87
      %p89 = scmp.eq.s32.totalorder %s21, 0
      %p90 = por %p88, %p89
      %s91 = ssub.s32 %s15, %s22
      %p92 = scmp.eq.s32.totalorder %s91, 0
      %s94 = sadd.s32 %s93, 1
      %s95 = scalar_select %p92, %s93, %s94
      %p98 = pneg %p92
      %p99 = scmp.eq.s32.totalorder %s15, 1
      %p100 = por %p98, %p99
      %p101 = scmp.ne.s32.totalorder %s93, %s96
      %p102 = scmp.eq.s32.totalorder %s15, 0
      %p103 = por %p101, %p102
      %p104 = scmp.ne.s32.totalorder %s93, %s96
      %p105 = scmp.eq.s32.totalorder %s20, 1
      %p106 = por %p104, %p105
      %p107 = scmp.ne.s32.totalorder %s96, %s97
      %p108 = scmp.eq.s32.totalorder %s20, 0
      %p109 = por %p107, %p108
      %p110 = scmp.ne.s32.totalorder %s96, %s97
      %p111 = scmp.eq.s32.totalorder %s21, 1
      %p112 = por %p110, %p111
      %p114 = scmp.ne.s32.totalorder %s97, %s113
      %p115 = scmp.eq.s32.totalorder %s21, 0
      %p116 = por %p114, %p115
      %p117 = scmp.le.s32.totalorder 1, %s15
      %p118 = scmp.lt.s32.totalorder %s15, 3
      %p119 = pnand %p117, %p118
      %p120 = pneg %p119
      // Predicated region
      $region9: #{_forward_impl.3} parent=5 // pred_check
        _
      $region10: #{_forward_impl.3} parent=5 // pred_check_branch
        %122 = sbr.rel (%p119) target = $region12
      $region11: #{_forward_impl.3} parent=5 // pred_region
        %s123 = ssub.s32 %s15, 1
        // Predicated region
        $region13: #{_forward_impl.3} parent=11 // pred_check
          %p124 = pneg %p62
        $region14: #{_forward_impl.3} parent=11 // pred_check_branch
          %126 = sbr.rel (%p124) target = $region16
        $region15: #{_forward_impl.3} parent=11 // pred_region
          _
        $region16: #{_forward_impl.3} parent=11 // pred_fallthru
          _
        // Predicated region
        $region17: #{_forward_impl.3} parent=11 // pred_check
          %p127 = pneg %p83
        $region18: #{_forward_impl.3} parent=11 // pred_check_branch
          %129 = sbr.rel (%p127) target = $region20
        $region19: #{_forward_impl.3} parent=11 // pred_region
          _
        $region20: #{_forward_impl.3} parent=11 // pred_fallthru
          _
      $region12: #{_forward_impl.3} parent=5 // pred_fallthru
        _
      %p130 = scmp.lt.s32.totalorder %s15, 2
      // Predicated region
      $region21: #{_forward_impl.3} parent=5 // pred_check
        %p131 = pneg %p130
      $region22: #{_forward_impl.3} parent=5 // pred_check_branch
        %133 = sbr.rel (%p131) target = $region24
      $region23: #{_forward_impl.3} parent=5 // pred_region
        // Predicated region
        $region25: #{_forward_impl.3} parent=23 // pred_check
          %p134 = pneg %p35
        $region26: #{_forward_impl.3} parent=23 // pred_check_branch
          %136 = sbr.rel (%p134) target = $region28
        $region27: #{_forward_impl.3} parent=23 // pred_region
          %s137 = sand.u32 %s25, 1
          %s138 = scalar_lea.sflag [#allocation3], %s137
          %s139 = sand.u32 %s25, 1
          %s140 = smul.addr %s139, 64
          %s141 = scalar_lea.vmem [#allocation2], %s140
          %s143 = ssub.s32 1024, 1024
          %144 = vsyncadd %s138, %s143
          %s145 = smul.addr %s15, 8
          %s146 = smul.addr %s145, 128
          %s147 = scalar_lea.hbm %s0, %s146
          %s148 = sshll.u32 %s141, 4
          %s149 = int_to_ptr.vmem [resolvable:$true] %s148
          %154 = dma.hbm_to_vmem [thread:$0]  %s147, 1024, %s149, %s138, 256, 256, 16
        $region28: #{_forward_impl.3} parent=23 // pred_fallthru
          _
      $region24: #{_forward_impl.3} parent=5 // pred_fallthru
        _
      %p155 = scmp.le.s32.totalorder 1, %s15
      %p156 = scmp.lt.s32.totalorder %s15, 3
      %p157 = pnand %p155, %p156
      %p158 = pneg %p157
      // Predicated region
      $region29: #{_forward_impl.3} parent=5 // pred_check
        _
      $region30: #{_forward_impl.3} parent=5 // pred_check_branch
        %160 = sbr.rel (%p157) target = $region32
      $region31: #{_forward_impl.3} parent=5 // pred_region
        %s161 = ssub.s32 %s15, 1
        %s162 = sand.u32 %s28, 1
        %s163 = scalar_lea.sflag [#allocation3], %s162
        %s164 = sand.u32 %s28, 1
        %s165 = smul.addr %s164, 64
        %s166 = scalar_lea.vmem [#allocation2], %s165
        // Predicated region
        $region33: #{_forward_impl.3} parent=31 // pred_check
          %p167 = pneg %p41
        $region34: #{_forward_impl.3} parent=31 // pred_check_branch
          %169 = sbr.rel (%p167) target = $region36
        $region35: #{_forward_impl.3} parent=31 // pred_region
          %170 = dma.done %s163, 1024
        $region36: #{_forward_impl.3} parent=31 // pred_fallthru
          _
        %s171 = sand.u32 %s28, 1
        %s172 = scalar_lea.sflag [#allocation3], %s171
        %s173 = sand.u32 %s28, 1
        %s174 = smul.addr %s173, 64
        %s175 = scalar_lea.vmem [#allocation2], %s174
        %p176 = pneg %p41
        %p177 = pneg %p38
        %p178 = pneg %p62
        %p179 = pneg %p59
        %p180 = pneg %p83
        %p181 = pneg %p80
        %p182 = pneg %p109
        %p183 = pneg %p106
        %s184 = sand.u32 %s96, 1
        %s185 = scalar_lea.sflag [#allocation4], %s184
        %s186 = sand.u32 %s96, 1
        %s187 = smul.addr %s186, 64
        %s188 = scalar_lea.vmem [#allocation5], %s187
        %v189 = vld [vmem:[%s166] sm:$0xff]
        %v190 = vld [vmem:[%s166 + $0x8] sm:$0xff]
        %v191 = vld [vmem:[%s166 + $0x10] sm:$0xff]
        %v192 = vld [vmem:[%s166 + $0x18] sm:$0xff]
        %v193 = vld [vmem:[%s166 + $0x20] sm:$0xff]
        %v194 = vld [vmem:[%s166 + $0x28] sm:$0xff]
        %v195 = vld [vmem:[%s166 + $0x30] sm:$0xff]
        %v196 = vld [vmem:[%s166 + $0x38] sm:$0xff]
        %v197 = vld [vmem:[%s1] sm:$0x3]
        %v199 = vlaneseq
        %v200 = vshrl.u32 %v199, 7
        %v201 = vsub.s32 0, %v200
        %v202 = vrot.slane %v197, %v201
        %v203 = vlaneseq
        %v204 = vshrl.u32 %v203, 7
        %v205 = vsub.s32 1, %v204
        %v206 = vrot.slane %v197, %v205
        %v209 = vmul.f32 %v189, %v202
        %v210 = vmul.f32 %v190, %v206
        %v211 = vmul.f32 %v191, %v202
        %v212 = vmul.f32 %v192, %v206
        %v213 = vmul.f32 %v193, %v202
        %v214 = vmul.f32 %v194, %v206
        %v215 = vmul.f32 %v195, %v202
        %v216 = vmul.f32 %v196, %v206
        %v217 = vld [vmem:[%s2] sm:$0x3]
        %v219 = vlaneseq
        %v220 = vshrl.u32 %v219, 7
        %v221 = vsub.s32 0, %v220
        %v222 = vrot.slane %v217, %v221
        %v223 = vlaneseq
        %v224 = vshrl.u32 %v223, 7
        %v225 = vsub.s32 1, %v224
        %v226 = vrot.slane %v217, %v225
        %v229 = vadd.f32 %v209, %v222
        %v230 = vadd.f32 %v210, %v226
        %v231 = vadd.f32 %v211, %v222
        %v232 = vadd.f32 %v212, %v226
        %v233 = vadd.f32 %v213, %v222
        %v234 = vadd.f32 %v214, %v226
        %v235 = vadd.f32 %v215, %v222
        %v236 = vadd.f32 %v216, %v226
        %vm237 = vcmp.ge.f32.partialorder %v229, 0.0
        %vm238 = vcmp.ge.f32.partialorder %v230, 0.0
        %vm239 = vcmp.ge.f32.partialorder %v231, 0.0
        %vm240 = vcmp.ge.f32.partialorder %v232, 0.0
        %vm241 = vcmp.ge.f32.partialorder %v233, 0.0
        %vm242 = vcmp.ge.f32.partialorder %v234, 0.0
        %vm243 = vcmp.ge.f32.partialorder %v235, 0.0
        %vm244 = vcmp.ge.f32.partialorder %v236, 0.0
        %v245 = vmul.f32 %v229, 0.02
        %v246 = vmul.f32 %v230, 0.02
        %v247 = vmul.f32 %v231, 0.02
        %v248 = vmul.f32 %v232, 0.02
        %v249 = vmul.f32 %v233, 0.02
        %v250 = vmul.f32 %v234, 0.02
        %v251 = vmul.f32 %v235, 0.02
        %v252 = vmul.f32 %v236, 0.02
        %v253 = vsel %vm237, %v229, %v245
        %v254 = vsel %vm238, %v230, %v246
        %v255 = vsel %vm239, %v231, %v247
        %v256 = vsel %vm240, %v232, %v248
        %v257 = vsel %vm241, %v233, %v249
        %v258 = vsel %vm242, %v234, %v250
        %v259 = vsel %vm243, %v235, %v251
        %v260 = vsel %vm244, %v236, %v252
        %261 = vst [vmem:[%s188] sm:$0xff] %v253
        %262 = vst [vmem:[%s188 + $0x8] sm:$0xff] %v254
        %263 = vst [vmem:[%s188 + $0x10] sm:$0xff] %v255
        %264 = vst [vmem:[%s188 + $0x18] sm:$0xff] %v256
        %265 = vst [vmem:[%s188 + $0x20] sm:$0xff] %v257
        %266 = vst [vmem:[%s188 + $0x28] sm:$0xff] %v258
        %267 = vst [vmem:[%s188 + $0x30] sm:$0xff] %v259
        %268 = vst [vmem:[%s188 + $0x38] sm:$0xff] %v260
        %s269 = sand.u32 %s96, 1
        %s270 = scalar_lea.sflag [#allocation4], %s269
        %s271 = sand.u32 %s96, 1
        %s272 = smul.addr %s271, 64
        %s273 = scalar_lea.vmem [#allocation5], %s272
        // Predicated region
        $region37: #{_forward_impl.3} parent=31 // pred_check
          %p274 = pneg %p106
        $region38: #{_forward_impl.3} parent=31 // pred_check_branch
          %276 = sbr.rel (%p274) target = $region40
        $region39: #{_forward_impl.3} parent=31 // pred_region
          %s278 = ssub.s32 1024, 1024
          %279 = vsyncadd %s270, %s278
          %s280 = smul.addr %s20, 8
          %s281 = smul.addr %s280, 128
          %s282 = scalar_lea.hbm %s3, %s281
          %s283 = sshll.u32 %s273, 4
          %s284 = int_to_ptr.vmem [resolvable:$true] %s283
          %289 = dma.vmem_to_hbm [thread:$0]  %s284, 1024, %s282, %s270, 256, 256, 16
        $region40: #{_forward_impl.3} parent=31 // pred_fallthru
          _
      $region32: #{_forward_impl.3} parent=5 // pred_fallthru
        _
      %p290 = scmp.le.s32.totalorder 2, %s15
      // Predicated region
      $region41: #{_forward_impl.3} parent=5 // pred_check
        %p291 = pneg %p290
      $region42: #{_forward_impl.3} parent=5 // pred_check_branch
        %293 = sbr.rel (%p291) target = $region44
      $region43: #{_forward_impl.3} parent=5 // pred_region
        %s294 = ssub.s32 %s15, 2
        // Predicated region
        $region45: #{_forward_impl.3} parent=43 // pred_check
          %p295 = pneg %p112
        $region46: #{_forward_impl.3} parent=43 // pred_check_branch
          %297 = sbr.rel (%p295) target = $region48
        $region47: #{_forward_impl.3} parent=43 // pred_region
          %s298 = sand.u32 %s97, 1
          %s299 = scalar_lea.sflag [#allocation4], %s298
          %s300 = sand.u32 %s97, 1
          %s301 = smul.addr %s300, 64
          %s302 = scalar_lea.vmem [#allocation5], %s301
          %303 = dma.done %s299, 1024
        $region48: #{_forward_impl.3} parent=43 // pred_fallthru
          _
      $region44: #{_forward_impl.3} parent=5 // pred_fallthru
        _
    $region6: #{_forward_impl.3} parent=1 // loop_footer
      %s19 = sadd.s32 1, %s15
    $region7: #{_forward_impl.3} parent=1 // loop_footer_branch
      %14 = sbr.rel target = $region3
    $region8: #{_forward_impl.3} parent=1 // loop_exit
      _
    %304 = vsyncpa [#allocation3], 1
    %s305 = scalar_lea.sflag [#allocation3], 1
    %306 = vsyncpa %s305, 1
    %307 = vsyncpa [#allocation4], 1
    %s308 = scalar_lea.sflag [#allocation4], 1
    %309 = vsyncpa %s308, 1

// kernel: _forward_impl.2
$region0: #{_forward_impl.2}
  #allocation0 [shape = 'u32[]', space=smem, size = 0x4, offset = 0x4, fixed_abs, tag = 'smem constant byte address 0x4 - core index']
  #allocation1 [shape = 'u32[144,128]{1,0:T(1,128)}', space=vmem, size = 0x12000, scoped, tag = 'internal scratch']
  %s0 = inlined_call_operand.vmem [shape: bf16[2,16,128], index: 0, kind: input, shape index: {}]
  %s1 = inlined_call_operand.vmem [shape: bf16[3,32,16], index: 1, kind: input, shape index: {}]
  %s2 = inlined_call_operand.hbm [shape: bf16[3,128,256], index: 2, kind: input, shape index: {}]
  %s3 = inlined_call_operand.hbm [shape: f32[2,32,256], index: 3, kind: output, shape index: {0}]
  %s4 = inlined_call_operand.vmem [shape: f32[2,1,256], index: 4, kind: output, shape index: {1}]
  %s5 = inlined_call_operand.vmem [shape: f32[2,1,256], index: 5, kind: output, shape index: {2}]
  %6 = xla_tuple %s3, %s4, %s5
  %s7 = sld [smem:[#allocation0]]
  $region65: #{_forward_impl.2} parent=0
    _
  %s9 = ssub.s32 1, %s7
  %s10 = scalar_select 0, %s9, %s7
  $region1: #{_forward_impl.2} parent=0
    #allocation2 [shape = 'u8[196608]{0}', space=vmem, size = 0x30000, scoped, tag = 'input window, operand 2, single buffered']
    #allocation3 [shape = 's32[2]{0}', space=sflag, size = 0x8, scoped, tag = 'scoped memory for _forward_impl.2']
    #allocation4 [shape = 's32[2]{0}', space=sflag, size = 0x8, scoped, tag = 'scoped memory for _forward_impl.2']
    #allocation5 [shape = 'u8[65536]{0}', space=vmem, size = 0x10000, scoped, tag = 'output window, operand 0']
    %11 = vsyncpa [#allocation3], 0
    %12 = vsyncpa [#allocation4], 0
    %s13 = scalar_lea.sflag [#allocation4], 1
    %14 = vsyncpa %s13, 0
    loop: start=0, step=1, limit=4
    $region2: #{_forward_impl.2} parent=1 // loop_pre_header
      _
    $region3: #{_forward_impl.2} parent=1 // loop_header
      %s16 = sphi 0, %s20
      %p17 = scmp.ge.s32.totalorder %s16, 4
      %s26 = sphi 0, %s28
      %s29 = sphi 0, %s26
      %s30 = sphi 0, %s29
      %s46 = sphi 0, %s30
      %s50 = sphi 0, %s50
      %s52 = sphi 0, %s50
      %s53 = sphi 0, %s52
      %s67 = sphi 0, %s53
      %s71 = sphi 0, %s71
      %s73 = sphi 0, %s71
      %s74 = sphi 0, %s73
      %s88 = sphi 0, %s74
      %s94 = sphi 0, %s96
      %s97 = sphi 0, %s94
      %s98 = sphi 0, %s97
      %s114 = sphi 0, %s98
      %s120 = sphi 0, %s122
      %s123 = sphi 0, %s120
      %s124 = sphi 0, %s123
      %s140 = sphi 0, %s124
      %s146 = sphi 0, %s148
      %s149 = sphi 0, %s146
      %s150 = sphi 0, %s149
      %s166 = sphi 0, %s150
    $region4: #{_forward_impl.2} parent=1 // loop_header_branch
      %19 = sbr.rel (%p17) target = $region8
    $region5: #{_forward_impl.2} parent=1 // loop_body
      %s21 = ssub.s32 %s16, 1
      %s22 = ssub.s32 %s16, 2
      %s23 = sadd.s32 %s16, 1
      %s24 = ssub.s32 %s16, %s23
      %p25 = scmp.eq.s32.totalorder %s24, 0
      %s27 = sadd.s32 %s26, 1
      %s28 = scalar_select %p25, %s26, %s27
      %p31 = pneg %p25
      %p32 = scmp.eq.s32.totalorder %s16, 1
      %p33 = por %p31, %p32
      %p34 = scmp.ne.s32.totalorder %s26, %s29
      %p35 = scmp.eq.s32.totalorder %s16, 0
      %p36 = por %p34, %p35
      %p37 = scmp.ne.s32.totalorder %s26, %s29
      %p38 = scmp.eq.s32.totalorder %s21, 1
      %p39 = por %p37, %p38
      %p40 = scmp.ne.s32.totalorder %s29, %s30
      %p41 = scmp.eq.s32.totalorder %s21, 0
      %p42 = por %p40, %p41
      %p43 = scmp.ne.s32.totalorder %s29, %s30
      %p44 = scmp.eq.s32.totalorder %s22, 1
      %p45 = por %p43, %p44
      %p47 = scmp.ne.s32.totalorder %s30, %s46
      %p48 = scmp.eq.s32.totalorder %s22, 0
      %p49 = por %p47, %p48
      %s51 = sadd.s32 %s50, 1
      %p54 = scmp.eq.s32.totalorder %s16, 1
      %p55 = scmp.ne.s32.totalorder %s50, %s52
      %p56 = scmp.eq.s32.totalorder %s16, 0
      %p57 = por %p55, %p56
      %p58 = scmp.ne.s32.totalorder %s50, %s52
      %p59 = scmp.eq.s32.totalorder %s21, 1
      %p60 = por %p58, %p59
      %p61 = scmp.ne.s32.totalorder %s52, %s53
      %p62 = scmp.eq.s32.totalorder %s21, 0
      %p63 = por %p61, %p62
      %p64 = scmp.ne.s32.totalorder %s52, %s53
      %p65 = scmp.eq.s32.totalorder %s22, 1
      %p66 = por %p64, %p65
      %p68 = scmp.ne.s32.totalorder %s53, %s67
      %p69 = scmp.eq.s32.totalorder %s22, 0
      %p70 = por %p68, %p69
      %s72 = sadd.s32 %s71, 1
      %p75 = scmp.eq.s32.totalorder %s16, 1
      %p76 = scmp.ne.s32.totalorder %s71, %s73
      %p77 = scmp.eq.s32.totalorder %s16, 0
      %p78 = por %p76, %p77
      %p79 = scmp.ne.s32.totalorder %s71, %s73
      %p80 = scmp.eq.s32.totalorder %s21, 1
      %p81 = por %p79, %p80
      %p82 = scmp.ne.s32.totalorder %s73, %s74
      %p83 = scmp.eq.s32.totalorder %s21, 0
      %p84 = por %p82, %p83
      %p85 = scmp.ne.s32.totalorder %s73, %s74
      %p86 = scmp.eq.s32.totalorder %s22, 1
      %p87 = por %p85, %p86
      %p89 = scmp.ne.s32.totalorder %s74, %s88
      %p90 = scmp.eq.s32.totalorder %s22, 0
      %p91 = por %p89, %p90
      %s92 = ssub.s32 %s16, %s23
      %p93 = scmp.eq.s32.totalorder %s92, 0
      %s95 = sadd.s32 %s94, 1
      %s96 = scalar_select %p93, %s94, %s95
      %p99 = pneg %p93
      %p100 = scmp.eq.s32.totalorder %s16, 1
      %p101 = por %p99, %p100
      %p102 = scmp.ne.s32.totalorder %s94, %s97
      %p103 = scmp.eq.s32.totalorder %s16, 0
      %p104 = por %p102, %p103
      %p105 = scmp.ne.s32.totalorder %s94, %s97
      %p106 = scmp.eq.s32.totalorder %s21, 1
      %p107 = por %p105, %p106
      %p108 = scmp.ne.s32.totalorder %s97, %s98
      %p109 = scmp.eq.s32.totalorder %s21, 0
      %p110 = por %p108, %p109
      %p111 = scmp.ne.s32.totalorder %s97, %s98
      %p112 = scmp.eq.s32.totalorder %s22, 1
      %p113 = por %p111, %p112
      %p115 = scmp.ne.s32.totalorder %s98, %s114
      %p116 = scmp.eq.s32.totalorder %s22, 0
      %p117 = por %p115, %p116
      %s118 = ssub.s32 %s16, %s23
      %p119 = scmp.eq.s32.totalorder %s118, 0
      %s121 = sadd.s32 %s120, 1
      %s122 = scalar_select %p119, %s120, %s121
      %p125 = pneg %p119
      %p126 = scmp.eq.s32.totalorder %s16, 1
      %p127 = por %p125, %p126
      %p128 = scmp.ne.s32.totalorder %s120, %s123
      %p129 = scmp.eq.s32.totalorder %s16, 0
      %p130 = por %p128, %p129
      %p131 = scmp.ne.s32.totalorder %s120, %s123
      %p132 = scmp.eq.s32.totalorder %s21, 1
      %p133 = por %p131, %p132
      %p134 = scmp.ne.s32.totalorder %s123, %s124
      %p135 = scmp.eq.s32.totalorder %s21, 0
      %p136 = por %p134, %p135
      %p137 = scmp.ne.s32.totalorder %s123, %s124
      %p138 = scmp.eq.s32.totalorder %s22, 1
      %p139 = por %p137, %p138
      %p141 = scmp.ne.s32.totalorder %s124, %s140
      %p142 = scmp.eq.s32.totalorder %s22, 0
      %p143 = por %p141, %p142
      %s144 = ssub.s32 %s16, %s23
      %p145 = scmp.eq.s32.totalorder %s144, 0
      %s147 = sadd.s32 %s146, 1
      %s148 = scalar_select %p145, %s146, %s147
      %p151 = pneg %p145
      %p152 = scmp.eq.s32.totalorder %s16, 1
      %p153 = por %p151, %p152
      %p154 = scmp.ne.s32.totalorder %s146, %s149
      %p155 = scmp.eq.s32.totalorder %s16, 0
      %p156 = por %p154, %p155
      %p157 = scmp.ne.s32.totalorder %s146, %s149
      %p158 = scmp.eq.s32.totalorder %s21, 1
      %p159 = por %p157, %p158
      %p160 = scmp.ne.s32.totalorder %s149, %s150
      %p161 = scmp.eq.s32.totalorder %s21, 0
      %p162 = por %p160, %p161
      %p163 = scmp.ne.s32.totalorder %s149, %s150
      %p164 = scmp.eq.s32.totalorder %s22, 1
      %p165 = por %p163, %p164
      %p167 = scmp.ne.s32.totalorder %s150, %s166
      %p168 = scmp.eq.s32.totalorder %s22, 0
      %p169 = por %p167, %p168
      %p170 = scmp.le.s32.totalorder 1, %s16
      %p171 = scmp.lt.s32.totalorder %s16, 3
      %p172 = pnand %p170, %p171
      %p173 = pneg %p172
      // Predicated region
      $region9: #{_forward_impl.2} parent=5 // pred_check
        _
      $region10: #{_forward_impl.2} parent=5 // pred_check_branch
        %175 = sbr.rel (%p172) target = $region12
      $region11: #{_forward_impl.2} parent=5 // pred_region
        %s176 = ssub.s32 %s16, 1
        // Predicated region
        $region13: #{_forward_impl.2} parent=11 // pred_check
          %p177 = pneg %p63
        $region14: #{_forward_impl.2} parent=11 // pred_check_branch
          %179 = sbr.rel (%p177) target = $region16
        $region15: #{_forward_impl.2} parent=11 // pred_region
          _
        $region16: #{_forward_impl.2} parent=11 // pred_fallthru
          _
        // Predicated region
        $region17: #{_forward_impl.2} parent=11 // pred_check
          %p180 = pneg %p84
        $region18: #{_forward_impl.2} parent=11 // pred_check_branch
          %182 = sbr.rel (%p180) target = $region20
        $region19: #{_forward_impl.2} parent=11 // pred_region
          %s184 = ssub.s32 6144, 6144
          %185 = vsyncadd [#allocation3], %s184
          %s186 = sshll.u32 [#allocation2], 4
          %s187 = int_to_ptr.vmem [resolvable:$true] %s186
          %192 = dma.hbm_to_vmem [thread:$0]  %s2, 6144, %s187, [#allocation3], 128, 128, 8
        $region20: #{_forward_impl.2} parent=11 // pred_fallthru
          _
      $region12: #{_forward_impl.2} parent=5 // pred_fallthru
        _
      %p193 = scmp.lt.s32.totalorder %s16, 2
      // Predicated region
      $region21: #{_forward_impl.2} parent=5 // pred_check
        %p194 = pneg %p193
      $region22: #{_forward_impl.2} parent=5 // pred_check_branch
        %196 = sbr.rel (%p194) target = $region24
      $region23: #{_forward_impl.2} parent=5 // pred_region
        // Predicated region
        $region25: #{_forward_impl.2} parent=23 // pred_check
          %p197 = pneg %p36
        $region26: #{_forward_impl.2} parent=23 // pred_check_branch
          %199 = sbr.rel (%p197) target = $region28
        $region27: #{_forward_impl.2} parent=23 // pred_region
          %p200 = scmp.lt.s32.totalorder %s16, 1
          %s201 = scalar_select %p200, %s16, 1
          %s202 = smul.addr %s201, 2
          %s203 = smul.addr %s202, 4
          %s204 = scalar_lea.vmem %s0, %s203
        $region28: #{_forward_impl.2} parent=23 // pred_fallthru
          _
      $region24: #{_forward_impl.2} parent=5 // pred_fallthru
        _
      %p205 = scmp.le.s32.totalorder 1, %s16
      %p206 = scmp.lt.s32.totalorder %s16, 3
      %p207 = pnand %p205, %p206
      %p208 = pneg %p207
      // Predicated region
      $region29: #{_forward_impl.2} parent=5 // pred_check
        _
      $region30: #{_forward_impl.2} parent=5 // pred_check_branch
        %210 = sbr.rel (%p207) target = $region32
      $region31: #{_forward_impl.2} parent=5 // pred_region
        %s211 = ssub.s32 %s16, 1
        // Predicated region
        $region33: #{_forward_impl.2} parent=31 // pred_check
          %p212 = pneg %p84
        $region34: #{_forward_impl.2} parent=31 // pred_check_branch
          %214 = sbr.rel (%p212) target = $region36
        $region35: #{_forward_impl.2} parent=31 // pred_region
          %215 = dma.done [#allocation3], 6144
        $region36: #{_forward_impl.2} parent=31 // pred_fallthru
          _
        %p216 = scmp.lt.s32.totalorder %s21, 1
        %s217 = scalar_select %p216, %s21, 1
        %s218 = smul.addr %s217, 2
        %s219 = smul.addr %s218, 4
        %s220 = scalar_lea.vmem %s0, %s219
        %p221 = pneg %p42
        %p222 = pneg %p39
        %p223 = pneg %p63
        %p224 = pneg %p60
        %p225 = pneg %p84
        %p226 = pneg %p81
        %p227 = pneg %p110
        %p228 = pneg %p107
        %s229 = sand.u32 %s97, 1
        %s230 = scalar_lea.sflag [#allocation4], %s229
        %s231 = sand.u32 %s97, 1
        %s232 = smul.addr %s231, 64
        %s233 = scalar_lea.vmem [#allocation5], %s232
        %p234 = pneg %p136
        %p235 = pneg %p133
        %p236 = scmp.lt.s32.totalorder %s21, 1
        %s237 = scalar_select %p236, %s21, 1
        %s238 = smul.addr %s237, 2
        %s239 = scalar_lea.vmem %s4, %s238
        %p240 = pneg %p162
        %p241 = pneg %p159
        %p242 = scmp.lt.s32.totalorder %s21, 1
        %s243 = scalar_select %p242, %s21, 1
        %s244 = smul.addr %s243, 2
        %s245 = scalar_lea.vmem %s5, %s244
        %p246 = scmp.lt.s32.totalorder %s21, 1
        %s247 = scalar_select %p246, %s21, 1
        %s248 = smul.addr %s247, 2
        %s249 = smul.addr %s248, 4
        %s250 = scalar_lea.vmem %s0, %s249
        %p251 = scmp.lt.s32.totalorder %s21, 1
        %s252 = scalar_select %p251, %s21, 1
        %s253 = smul.addr %s252, 2
        %s254 = scalar_lea.vmem %s4, %s253
        %p255 = scmp.lt.s32.totalorder %s21, 1
        %s256 = scalar_select %p255, %s21, 1
        %s257 = smul.addr %s256, 2
        %s258 = scalar_lea.vmem %s5, %s257
        %v260 = vld [vmem:[%s250] sm:$0xf]
        %v261 = vld [vmem:[%s250 + $0x4] sm:$0xf]
        %v262 = vld [vmem:[%s1] sm:$0xf]
        %v263 = vld [vmem:[%s1 + $0x4] sm:$0xf]
        %v264 = vld [vmem:[%s1 + $0x8] sm:$0xf]
        %v265 = vld [vmem:[%s1 + $0xc] sm:$0xf]
        %v270 = vunpack.c.l.b16 %v262
        %v271 = vunpack.c.l.b16 %v263
        %v272 = vunpack.c.l.b16 %v264
        %v273 = vunpack.c.l.b16 %v265
        %v274 = vpack.c.b16 %v271, %v270
        %v275 = vpack.c.b16 %v273, %v272
        %v278 = vunpack.c.l.b16 %v260
        %v279 = vunpack.c.l.b16 %v261
        %v280 = vpack.c.b16 %v279, %v278
        %vm282 = vcmask 130048
        %v284 = vsel %vm282, %v274, 0
        %v287 = vsel %vm282, %v275, 0
        %289 = vmatprep.subr.bf16.mxu0 0
        %290 = vmatpush1.bf16.msra.mxu0 %v280
        %291 = vmatprep.subr.bf16.mxu0 0
        %292 = vmatpush1.bf16.msra.mxu0 0
        %293 = vmatprep.subr.bf16.mxu0 0
        %294 = vmatpush1.bf16.msra.mxu0 0
        %295 = vmatprep.subr.bf16.mxu0 0
        %296 = vmatpush1.bf16.msra.mxu0 0
        %297 = vmatprep.subr.bf16.mxu0 0
        %298 = vmatpush1.bf16.msra.mxu0 0
        %299 = vmatprep.subr.bf16.mxu0 0
        %300 = vmatpush1.bf16.msra.mxu0 0
        %301 = vmatprep.subr.bf16.mxu0 0
        %302 = vmatpush1.bf16.msra.mxu0 0
        %303 = vmatprep.subr.bf16.mxu0 0
        %304 = vmatpush1.bf16.msra.mxu0 0
        %305 = vmatprep.subr.bf16.mxu0 0
        %306 = vmatpush1.bf16.msra.mxu0 0
        %307 = vmatprep.subr.bf16.mxu0 0
        %308 = vmatpush1.bf16.msra.mxu0 0
        %309 = vmatprep.subr.bf16.mxu0 0
        %310 = vmatpush1.bf16.msra.mxu0 0
        %311 = vmatprep.subr.bf16.mxu0 0
        %312 = vmatpush1.bf16.msra.mxu0 0
        %313 = vmatprep.subr.bf16.mxu0 0
        %314 = vmatpush1.bf16.msra.mxu0 0
        %315 = vmatprep.subr.bf16.mxu0 0
        %316 = vmatpush1.bf16.msra.mxu0 0
        %317 = vmatprep.subr.bf16.mxu0 0
        %318 = vmatpush1.bf16.msra.mxu0 0
        %319 = vmatprep.subr.bf16.mxu0 0
        %320 = vmatpush1.bf16.msra.mxu0 0
        %321 = vmatprep.mubr.bf16.mxu0 0
        %322 = vmatmul.mubr.bf16.gmra.mrb[0].mxu0 %v284
        %v323 = vpop.f32.mrb[0].mxu0
        %v324 = vadd.f32 0.0, %v323
        %v325 = vpop.f32.mrb[0].mxu0
        %v326 = vpop.f32.mrb[0].mxu0
        %v327 = vadd.f32 0.0, %v326
        %v328 = vpop.f32.mrb[0].mxu0
        %329 = vmatprep.mubr.bf16.mxu0 0
        %330 = vmatmul.mubr.bf16.gmra.mrb[0].mxu0 %v287
        %v331 = vpop.f32.mrb[0].mxu0
        %v332 = vadd.f32 0.0, %v331
        %v333 = vpop.f32.mrb[0].mxu0
        %v334 = vpop.f32.mrb[0].mxu0
        %v335 = vadd.f32 0.0, %v334
        %v336 = vpop.f32.mrb[0].mxu0
        %337 = vdwg.mxu0
        %v338 = vpack.c.bf16 %v327, %v324
        %v339 = vpack.c.bf16 %v335, %v332
        %v340 = vld [vmem:[#allocation2] sm:$0xff]
        %v341 = vld [vmem:[#allocation2 + $0x8] sm:$0xff]
        %v342 = vld [vmem:[#allocation2 + $0x10] sm:$0xff]
        %v343 = vld [vmem:[#allocation2 + $0x18] sm:$0xff]
        %v344 = vld [vmem:[#allocation2 + $0x20] sm:$0xff]
        %v345 = vld [vmem:[#allocation2 + $0x28] sm:$0xff]
        %v346 = vld [vmem:[#allocation2 + $0x30] sm:$0xff]
        %v347 = vld [vmem:[#allocation2 + $0x38] sm:$0xff]
        %v348 = vld [vmem:[#allocation2 + $0x40] sm:$0xff]
        %v349 = vld [vmem:[#allocation2 + $0x48] sm:$0xff]
        %v350 = vld [vmem:[#allocation2 + $0x50] sm:$0xff]
        %v351 = vld [vmem:[#allocation2 + $0x58] sm:$0xff]
        %v352 = vld [vmem:[#allocation2 + $0x60] sm:$0xff]
        %v353 = vld [vmem:[#allocation2 + $0x68] sm:$0xff]
        %v354 = vld [vmem:[#allocation2 + $0x70] sm:$0xff]
        %v355 = vld [vmem:[#allocation2 + $0x78] sm:$0xff]
        %s356 = scalar_lea.vmem %s1, 16
        %v357 = vld [vmem:[%s356] sm:$0xf]
        %v358 = vld [vmem:[%s356 + $0x4] sm:$0xf]
        %v359 = vld [vmem:[%s356 + $0x8] sm:$0xf]
        %v360 = vld [vmem:[%s356 + $0xc] sm:$0xf]
        %v365 = vunpack.c.l.b16 %v357
        %v366 = vunpack.c.l.b16 %v358
        %v367 = vunpack.c.l.b16 %v359
        %v368 = vunpack.c.l.b16 %v360
        %v369 = vpack.c.b16 %v366, %v365
        %v370 = vpack.c.b16 %v368, %v367
        %v372 = vsel %vm282, %v369, 0
        %v375 = vsel %vm282, %v370, 0
        %377 = vmatprep.subr.bf16.mxu0 0
        %378 = vmatpush1.bf16.msra.mxu0 %v280
        %379 = vmatprep.subr.bf16.mxu0 0
        %380 = vmatpush1.bf16.msra.mxu0 0
        %381 = vmatprep.subr.bf16.mxu0 0
        %382 = vmatpush1.bf16.msra.mxu0 0
        %383 = vmatprep.subr.bf16.mxu0 0
        %384 = vmatpush1.bf16.msra.mxu0 0
        %385 = vmatprep.subr.bf16.mxu0 0
        %386 = vmatpush1.bf16.msra.mxu0 0
        %387 = vmatprep.subr.bf16.mxu0 0
        %388 = vmatpush1.bf16.msra.mxu0 0
        %389 = vmatprep.subr.bf16.mxu0 0
        %390 = vmatpush1.bf16.msra.mxu0 0
        %391 = vmatprep.subr.bf16.mxu0 0
        %392 = vmatpush1.bf16.msra.mxu0 0
        %393 = vmatprep.subr.bf16.mxu0 0
        %394 = vmatpush1.bf16.msra.mxu0 0
        %395 = vmatprep.subr.bf16.mxu0 0
        %396 = vmatpush1.bf16.msra.mxu0 0
        %397 = vmatprep.subr.bf16.mxu0 0
        %398 = vmatpush1.bf16.msra.mxu0 0
        %399 = vmatprep.subr.bf16.mxu0 0
        %400 = vmatpush1.bf16.msra.mxu0 0
        %401 = vmatprep.subr.bf16.mxu0 0
        %402 = vmatpush1.bf16.msra.mxu0 0
        %403 = vmatprep.subr.bf16.mxu0 0
        %404 = vmatpush1.bf16.msra.mxu0 0
        %405 = vmatprep.subr.bf16.mxu0 0
        %406 = vmatpush1.bf16.msra.mxu0 0
        %407 = vmatprep.subr.bf16.mxu0 0
        %408 = vmatpush1.bf16.msra.mxu0 0
        %409 = vmatprep.mubr.bf16.mxu0 0
        %410 = vmatmul.mubr.bf16.gmra.mrb[0].mxu0 %v372
        %v411 = vpop.f32.mrb[0].mxu0
        %v412 = vadd.f32 0.0, %v411
        %v413 = vpop.f32.mrb[0].mxu0
        %v414 = vpop.f32.mrb[0].mxu0
        %v415 = vadd.f32 0.0, %v414
        %v416 = vpop.f32.mrb[0].mxu0
        %417 = vmatprep.mubr.bf16.mxu0 0
        %418 = vmatmul.mubr.bf16.gmra.mrb[0].mxu0 %v375
        %v419 = vpop.f32.mrb[0].mxu0
        %v420 = vadd.f32 0.0, %v419
        %v421 = vpop.f32.mrb[0].mxu0
        %v422 = vpop.f32.mrb[0].mxu0
        %v423 = vadd.f32 0.0, %v422
        %v424 = vpop.f32.mrb[0].mxu0
        %425 = vdwg.mxu0
        %v426 = vpack.c.bf16 %v415, %v412
        %v427 = vpack.c.bf16 %v423, %v420
        %s428 = scalar_lea.vmem [#allocation2], 128
        %v429 = vld [vmem:[%s428] sm:$0xff]
        %v430 = vld [vmem:[%s428 + $0x8] sm:$0xff]
        %v431 = vld [vmem:[%s428 + $0x10] sm:$0xff]
        %v432 = vld [vmem:[%s428 + $0x18] sm:$0xff]
        %v433 = vld [vmem:[%s428 + $0x20] sm:$0xff]
        %v434 = vld [vmem:[%s428 + $0x28] sm:$0xff]
        %v435 = vld [vmem:[%s428 + $0x30] sm:$0xff]
        %v436 = vld [vmem:[%s428 + $0x38] sm:$0xff]
        %v437 = vld [vmem:[%s428 + $0x40] sm:$0xff]
        %v438 = vld [vmem:[%s428 + $0x48] sm:$0xff]
        %v439 = vld [vmem:[%s428 + $0x50] sm:$0xff]
        %v440 = vld [vmem:[%s428 + $0x58] sm:$0xff]
        %v441 = vld [vmem:[%s428 + $0x60] sm:$0xff]
        %v442 = vld [vmem:[%s428 + $0x68] sm:$0xff]
        %v443 = vld [vmem:[%s428 + $0x70] sm:$0xff]
        %v444 = vld [vmem:[%s428 + $0x78] sm:$0xff]
        %v461 = vunpack.c.l.b16 %v429
        %v462 = vunpack.c.h.b16 %v429
        %v463 = vunpack.c.l.b16 %v430
        %v464 = vunpack.c.h.b16 %v430
        %v465 = vunpack.c.l.b16 %v431
        %v466 = vunpack.c.h.b16 %v431
        %v467 = vunpack.c.l.b16 %v432
        %v468 = vunpack.c.h.b16 %v432
        %v469 = vunpack.c.l.b16 %v433
        %v470 = vunpack.c.h.b16 %v433
        %v471 = vunpack.c.l.b16 %v434
        %v472 = vunpack.c.h.b16 %v434
        %v473 = vunpack.c.l.b16 %v435
        %v474 = vunpack.c.h.b16 %v435
        %v475 = vunpack.c.l.b16 %v436
        %v476 = vunpack.c.h.b16 %v436
        %v477 = vunpack.c.l.b16 %v437
        %v478 = vunpack.c.h.b16 %v437
        %v479 = vunpack.c.l.b16 %v438
        %v480 = vunpack.c.h.b16 %v438
        %v481 = vunpack.c.l.b16 %v439
        %v482 = vunpack.c.h.b16 %v439
        %v483 = vunpack.c.l.b16 %v440
        %v484 = vunpack.c.h.b16 %v440
        %v485 = vunpack.c.l.b16 %v441
        %v486 = vunpack.c.h.b16 %v441
        %v487 = vunpack.c.l.b16 %v442
        %v488 = vunpack.c.h.b16 %v442
        %v489 = vunpack.c.l.b16 %v443
        %v490 = vunpack.c.h.b16 %v443
        %v491 = vunpack.c.l.b16 %v444
        %v492 = vunpack.c.h.b16 %v444
        %v493 = vpack.c.b16 %v463, %v461
        %v494 = vpack.c.b16 %v464, %v462
        %v495 = vpack.c.b16 %v467, %v465
        %v496 = vpack.c.b16 %v468, %v466
        %v497 = vpack.c.b16 %v471, %v469
        %v498 = vpack.c.b16 %v472, %v470
        %v499 = vpack.c.b16 %v475, %v473
        %v500 = vpack.c.b16 %v476, %v474
        %v501 = vpack.c.b16 %v479, %v477
        %v502 = vpack.c.b16 %v480, %v478
        %v503 = vpack.c.b16 %v483, %v481
        %v504 = vpack.c.b16 %v484, %v482
        %v505 = vpack.c.b16 %v487, %v485
        %v506 = vpack.c.b16 %v488, %v486
        %v507 = vpack.c.b16 %v491, %v489
        %v508 = vpack.c.b16 %v492, %v490
        %525 = vmatprep.subr.bf16.mxu0 %v494
        %526 = vmatpush1.bf16.msra.mxu0 %v493
        %527 = vmatprep.subr.bf16.mxu0 %v496
        %528 = vmatpush1.bf16.msra.mxu0 %v495
        %529 = vmatprep.subr.bf16.mxu0 %v498
        %530 = vmatpush1.bf16.msra.mxu0 %v497
        %531 = vmatprep.subr.bf16.mxu0 %v500
        %532 = vmatpush1.bf16.msra.mxu0 %v499
        %533 = vmatprep.subr.bf16.mxu0 %v502
        %534 = vmatpush1.bf16.msra.mxu0 %v501
        %535 = vmatprep.subr.bf16.mxu0 %v504
        %536 = vmatpush1.bf16.msra.mxu0 %v503
        %537 = vmatprep.subr.bf16.mxu0 %v506
        %538 = vmatpush1.bf16.msra.mxu0 %v505
        %539 = vmatprep.subr.bf16.mxu0 %v508
        %540 = vmatpush1.bf16.msra.mxu0 %v507
        %541 = vmatprep.subr.bf16.mxu0 0
        %542 = vmatpush1.bf16.msra.mxu0 0
        %543 = vmatprep.subr.bf16.mxu0 0
        %544 = vmatpush1.bf16.msra.mxu0 0
        %545 = vmatprep.subr.bf16.mxu0 0
        %546 = vmatpush1.bf16.msra.mxu0 0
        %547 = vmatprep.subr.bf16.mxu0 0
        %548 = vmatpush1.bf16.msra.mxu0 0
        %549 = vmatprep.subr.bf16.mxu0 0
        %550 = vmatpush1.bf16.msra.mxu0 0
        %551 = vmatprep.subr.bf16.mxu0 0
        %552 = vmatpush1.bf16.msra.mxu0 0
        %553 = vmatprep.subr.bf16.mxu0 0
        %554 = vmatpush1.bf16.msra.mxu0 0
        %555 = vmatprep.subr.bf16.mxu0 0
        %556 = vmatpush1.bf16.msra.mxu0 0
        %557 = vmatprep.mubr.bf16.mxu0 0
        %558 = vmatmul.mubr.bf16.gmra.mrb[0].mxu0 %v426
        %v559 = vpop.f32.mrb[0].mxu0
        %v560 = vadd.f32 0.0, %v559
        %v561 = vpop.f32.mrb[0].mxu0
        %v562 = vadd.f32 0.0, %v561
        %v563 = vpop.f32.mrb[0].mxu0
        %v564 = vadd.f32 0.0, %v563
        %v565 = vpop.f32.mrb[0].mxu0
        %v566 = vadd.f32 0.0, %v565
        %567 = vmatprep.mubr.bf16.mxu0 0
        %568 = vmatmul.mubr.bf16.gmra.mrb[0].mxu0 %v427
        %v569 = vpop.f32.mrb[0].mxu0
        %v570 = vadd.f32 0.0, %v569
        %v571 = vpop.f32.mrb[0].mxu0
        %v572 = vadd.f32 0.0, %v571
        %v573 = vpop.f32.mrb[0].mxu0
        %v574 = vadd.f32 0.0, %v573
        %v575 = vpop.f32.mrb[0].mxu0
        %v576 = vadd.f32 0.0, %v575
        %577 = vdwg.mxu0
        %v594 = vunpack.c.l.b16 %v340
        %v595 = vunpack.c.h.b16 %v340
        %v596 = vunpack.c.l.b16 %v341
        %v597 = vunpack.c.h.b16 %v341
        %v598 = vunpack.c.l.b16 %v342
        %v599 = vunpack.c.h.b16 %v342
        %v600 = vunpack.c.l.b16 %v343
        %v601 = vunpack.c.h.b16 %v343
        %v602 = vunpack.c.l.b16 %v344
        %v603 = vunpack.c.h.b16 %v344
        %v604 = vunpack.c.l.b16 %v345
        %v605 = vunpack.c.h.b16 %v345
        %v606 = vunpack.c.l.b16 %v346
        %v607 = vunpack.c.h.b16 %v346
        %v608 = vunpack.c.l.b16 %v347
        %v609 = vunpack.c.h.b16 %v347
        %v610 = vunpack.c.l.b16 %v348
        %v611 = vunpack.c.h.b16 %v348
        %v612 = vunpack.c.l.b16 %v349
        %v613 = vunpack.c.h.b16 %v349
        %v614 = vunpack.c.l.b16 %v350
        %v615 = vunpack.c.h.b16 %v350
        %v616 = vunpack.c.l.b16 %v351
        %v617 = vunpack.c.h.b16 %v351
        %v618 = vunpack.c.l.b16 %v352
        %v619 = vunpack.c.h.b16 %v352
        %v620 = vunpack.c.l.b16 %v353
        %v621 = vunpack.c.h.b16 %v353
        %v622 = vunpack.c.l.b16 %v354
        %v623 = vunpack.c.h.b16 %v354
        %v624 = vunpack.c.l.b16 %v355
        %v625 = vunpack.c.h.b16 %v355
        %v626 = vpack.c.b16 %v596, %v594
        %v627 = vpack.c.b16 %v597, %v595
        %v628 = vpack.c.b16 %v600, %v598
        %v629 = vpack.c.b16 %v601, %v599
        %v630 = vpack.c.b16 %v604, %v602
        %v631 = vpack.c.b16 %v605, %v603
        %v632 = vpack.c.b16 %v608, %v606
        %v633 = vpack.c.b16 %v609, %v607
        %v634 = vpack.c.b16 %v612, %v610
        %v635 = vpack.c.b16 %v613, %v611
        %v636 = vpack.c.b16 %v616, %v614
        %v637 = vpack.c.b16 %v617, %v615
        %v638 = vpack.c.b16 %v620, %v618
        %v639 = vpack.c.b16 %v621, %v619
        %v640 = vpack.c.b16 %v624, %v622
        %v641 = vpack.c.b16 %v625, %v623
        %658 = vmatprep.subr.bf16.mxu0 %v627
        %659 = vmatpush1.bf16.msra.mxu0 %v626
        %660 = vmatprep.subr.bf16.mxu0 %v629
        %661 = vmatpush1.bf16.msra.mxu0 %v628
        %662 = vmatprep.subr.bf16.mxu0 %v631
        %663 = vmatpush1.bf16.msra.mxu0 %v630
        %664 = vmatprep.subr.bf16.mxu0 %v633
        %665 = vmatpush1.bf16.msra.mxu0 %v632
        %666 = vmatprep.subr.bf16.mxu0 %v635
        %667 = vmatpush1.bf16.msra.mxu0 %v634
        %668 = vmatprep.subr.bf16.mxu0 %v637
        %669 = vmatpush1.bf16.msra.mxu0 %v636
        %670 = vmatprep.subr.bf16.mxu0 %v639
        %671 = vmatpush1.bf16.msra.mxu0 %v638
        %672 = vmatprep.subr.bf16.mxu0 %v641
        %673 = vmatpush1.bf16.msra.mxu0 %v640
        %674 = vmatprep.subr.bf16.mxu0 0
        %675 = vmatpush1.bf16.msra.mxu0 0
        %676 = vmatprep.subr.bf16.mxu0 0
        %677 = vmatpush1.bf16.msra.mxu0 0
        %678 = vmatprep.subr.bf16.mxu0 0
        %679 = vmatpush1.bf16.msra.mxu0 0
        %680 = vmatprep.subr.bf16.mxu0 0
        %681 = vmatpush1.bf16.msra.mxu0 0
        %682 = vmatprep.subr.bf16.mxu0 0
        %683 = vmatpush1.bf16.msra.mxu0 0
        %684 = vmatprep.subr.bf16.mxu0 0
        %685 = vmatpush1.bf16.msra.mxu0 0
        %686 = vmatprep.subr.bf16.mxu0 0
        %687 = vmatpush1.bf16.msra.mxu0 0
        %688 = vmatprep.subr.bf16.mxu0 0
        %689 = vmatpush1.bf16.msra.mxu0 0
        %690 = vmatprep.mubr.bf16.mxu0 0
        %691 = vmatmul.mubr.bf16.gmra.mrb[0].mxu0 %v338
        %v692 = vpop.f32.mrb[0].mxu0
        %v693 = vadd.f32 %v560, %v692
        %v694 = vpop.f32.mrb[0].mxu0
        %v695 = vadd.f32 %v562, %v694
        %v696 = vpop.f32.mrb[0].mxu0
        %v697 = vadd.f32 %v564, %v696
        %v698 = vpop.f32.mrb[0].mxu0
        %v699 = vadd.f32 %v566, %v698
        %700 = vmatprep.mubr.bf16.mxu0 0
        %701 = vmatmul.mubr.bf16.gmra.mrb[0].mxu0 %v339
        %v702 = vpop.f32.mrb[0].mxu0
        %v703 = vadd.f32 %v570, %v702
        %v704 = vpop.f32.mrb[0].mxu0
        %v705 = vadd.f32 %v572, %v704
        %v706 = vpop.f32.mrb[0].mxu0
        %v707 = vadd.f32 %v574, %v706
        %v708 = vpop.f32.mrb[0].mxu0
        %v709 = vadd.f32 %v576, %v708
        %710 = vdwg.mxu0
        %s711 = scalar_lea.vmem %s1, 32
        %v712 = vld [vmem:[%s711] sm:$0xf]
        %v713 = vld [vmem:[%s711 + $0x4] sm:$0xf]
        %v714 = vld [vmem:[%s711 + $0x8] sm:$0xf]
        %v715 = vld [vmem:[%s711 + $0xc] sm:$0xf]
        %v720 = vunpack.c.l.b16 %v712
        %v721 = vunpack.c.l.b16 %v713
        %v722 = vunpack.c.l.b16 %v714
        %v723 = vunpack.c.l.b16 %v715
        %v724 = vpack.c.b16 %v721, %v720
        %v725 = vpack.c.b16 %v723, %v722
        %v727 = vsel %vm282, %v724, 0
        %v730 = vsel %vm282, %v725, 0
        %732 = vmatprep.subr.bf16.mxu0 0
        %733 = vmatpush1.bf16.msra.mxu0 %v280
        %734 = vmatprep.subr.bf16.mxu0 0
        %735 = vmatpush1.bf16.msra.mxu0 0
        %736 = vmatprep.subr.bf16.mxu0 0
        %737 = vmatpush1.bf16.msra.mxu0 0
        %738 = vmatprep.subr.bf16.mxu0 0
        %739 = vmatpush1.bf16.msra.mxu0 0
        %740 = vmatprep.subr.bf16.mxu0 0
        %741 = vmatpush1.bf16.msra.mxu0 0
        %742 = vmatprep.subr.bf16.mxu0 0
        %743 = vmatpush1.bf16.msra.mxu0 0
        %744 = vmatprep.subr.bf16.mxu0 0
        %745 = vmatpush1.bf16.msra.mxu0 0
        %746 = vmatprep.subr.bf16.mxu0 0
        %747 = vmatpush1.bf16.msra.mxu0 0
        %748 = vmatprep.subr.bf16.mxu0 0
        %749 = vmatpush1.bf16.msra.mxu0 0
        %750 = vmatprep.subr.bf16.mxu0 0
        %751 = vmatpush1.bf16.msra.mxu0 0
        %752 = vmatprep.subr.bf16.mxu0 0
        %753 = vmatpush1.bf16.msra.mxu0 0
        %754 = vmatprep.subr.bf16.mxu0 0
        %755 = vmatpush1.bf16.msra.mxu0 0
        %756 = vmatprep.subr.bf16.mxu0 0
        %757 = vmatpush1.bf16.msra.mxu0 0
        %758 = vmatprep.subr.bf16.mxu0 0
        %759 = vmatpush1.bf16.msra.mxu0 0
        %760 = vmatprep.subr.bf16.mxu0 0
        %761 = vmatpush1.bf16.msra.mxu0 0
        %762 = vmatprep.subr.bf16.mxu0 0
        %763 = vmatpush1.bf16.msra.mxu0 0
        %764 = vmatprep.mubr.bf16.mxu0 0
        %765 = vmatmul.mubr.bf16.gmra.mrb[0].mxu0 %v727
        %v766 = vpop.f32.mrb[0].mxu0
        %v767 = vadd.f32 0.0, %v766
        %v768 = vpop.f32.mrb[0].mxu0
        %v769 = vpop.f32.mrb[0].mxu0
        %v770 = vadd.f32 0.0, %v769
        %v771 = vpop.f32.mrb[0].mxu0
        %772 = vmatprep.mubr.bf16.mxu0 0
        %773 = vmatmul.mubr.bf16.gmra.mrb[0].mxu0 %v730
        %v774 = vpop.f32.mrb[0].mxu0
        %v775 = vadd.f32 0.0, %v774
        %v776 = vpop.f32.mrb[0].mxu0
        %v777 = vpop.f32.mrb[0].mxu0
        %v778 = vadd.f32 0.0, %v777
        %v779 = vpop.f32.mrb[0].mxu0
        %780 = vdwg.mxu0
        %v781 = vpack.c.bf16 %v770, %v767
        %v782 = vpack.c.bf16 %v778, %v775
        %s783 = scalar_lea.vmem [#allocation2], 256
        %v784 = vld [vmem:[%s783] sm:$0xff]
        %v785 = vld [vmem:[%s783 + $0x8] sm:$0xff]
        %v786 = vld [vmem:[%s783 + $0x10] sm:$0xff]
        %v787 = vld [vmem:[%s783 + $0x18] sm:$0xff]
        %v788 = vld [vmem:[%s783 + $0x20] sm:$0xff]
        %v789 = vld [vmem:[%s783 + $0x28] sm:$0xff]
        %v790 = vld [vmem:[%s783 + $0x30] sm:$0xff]
        %v791 = vld [vmem:[%s783 + $0x38] sm:$0xff]
        %v792 = vld [vmem:[%s783 + $0x40] sm:$0xff]
        %v793 = vld [vmem:[%s783 + $0x48] sm:$0xff]
        %v794 = vld [vmem:[%s783 + $0x50] sm:$0xff]
        %v795 = vld [vmem:[%s783 + $0x58] sm:$0xff]
        %v796 = vld [vmem:[%s783 + $0x60] sm:$0xff]
        %v797 = vld [vmem:[%s783 + $0x68] sm:$0xff]
        %v798 = vld [vmem:[%s783 + $0x70] sm:$0xff]
        %v799 = vld [vmem:[%s783 + $0x78] sm:$0xff]
        %v816 = vunpack.c.l.b16 %v784
        %v817 = vunpack.c.h.b16 %v784
        %v818 = vunpack.c.l.b16 %v785
        %v819 = vunpack.c.h.b16 %v785
        %v820 = vunpack.c.l.b16 %v786
        %v821 = vunpack.c.h.b16 %v786
        %v822 = vunpack.c.l.b16 %v787
        %v823 = vunpack.c.h.b16 %v787
        %v824 = vunpack.c.l.b16 %v788
        %v825 = vunpack.c.h.b16 %v788
        %v826 = vunpack.c.l.b16 %v789
        %v827 = vunpack.c.h.b16 %v789
        %v828 = vunpack.c.l.b16 %v790
        %v829 = vunpack.c.h.b16 %v790
        %v830 = vunpack.c.l.b16 %v791
        %v831 = vunpack.c.h.b16 %v791
        %v832 = vunpack.c.l.b16 %v792
        %v833 = vunpack.c.h.b16 %v792
        %v834 = vunpack.c.l.b16 %v793
        %v835 = vunpack.c.h.b16 %v793
        %v836 = vunpack.c.l.b16 %v794
        %v837 = vunpack.c.h.b16 %v794
        %v838 = vunpack.c.l.b16 %v795
        %v839 = vunpack.c.h.b16 %v795
        %v840 = vunpack.c.l.b16 %v796
        %v841 = vunpack.c.h.b16 %v796
        %v842 = vunpack.c.l.b16 %v797
        %v843 = vunpack.c.h.b16 %v797
        %v844 = vunpack.c.l.b16 %v798
        %v845 = vunpack.c.h.b16 %v798
        %v846 = vunpack.c.l.b16 %v799
        %v847 = vunpack.c.h.b16 %v799
        %v848 = vpack.c.b16 %v818, %v816
        %v849 = vpack.c.b16 %v819, %v817
        %v850 = vpack.c.b16 %v822, %v820
        %v851 = vpack.c.b16 %v823, %v821
        %v852 = vpack.c.b16 %v826, %v824
        %v853 = vpack.c.b16 %v827, %v825
        %v854 = vpack.c.b16 %v830, %v828
        %v855 = vpack.c.b16 %v831, %v829
        %v856 = vpack.c.b16 %v834, %v832
        %v857 = vpack.c.b16 %v835, %v833
        %v858 = vpack.c.b16 %v838, %v836
        %v859 = vpack.c.b16 %v839, %v837
        %v860 = vpack.c.b16 %v842, %v840
        %v861 = vpack.c.b16 %v843, %v841
        %v862 = vpack.c.b16 %v846, %v844
        %v863 = vpack.c.b16 %v847, %v845
        %880 = vmatprep.subr.bf16.mxu0 %v849
        %881 = vmatpush1.bf16.msra.mxu0 %v848
        %882 = vmatprep.subr.bf16.mxu0 %v851
        %883 = vmatpush1.bf16.msra.mxu0 %v850
        %884 = vmatprep.subr.bf16.mxu0 %v853
        %885 = vmatpush1.bf16.msra.mxu0 %v852
        %886 = vmatprep.subr.bf16.mxu0 %v855
        %887 = vmatpush1.bf16.msra.mxu0 %v854
        %888 = vmatprep.subr.bf16.mxu0 %v857
        %889 = vmatpush1.bf16.msra.mxu0 %v856
        %890 = vmatprep.subr.bf16.mxu0 %v859
        %891 = vmatpush1.bf16.msra.mxu0 %v858
        %892 = vmatprep.subr.bf16.mxu0 %v861
        %893 = vmatpush1.bf16.msra.mxu0 %v860
        %894 = vmatprep.subr.bf16.mxu0 %v863
        %895 = vmatpush1.bf16.msra.mxu0 %v862
        %896 = vmatprep.subr.bf16.mxu0 0
        %897 = vmatpush1.bf16.msra.mxu0 0
        %898 = vmatprep.subr.bf16.mxu0 0
        %899 = vmatpush1.bf16.msra.mxu0 0
        %900 = vmatprep.subr.bf16.mxu0 0
        %901 = vmatpush1.bf16.msra.mxu0 0
        %902 = vmatprep.subr.bf16.mxu0 0
        %903 = vmatpush1.bf16.msra.mxu0 0
        %904 = vmatprep.subr.bf16.mxu0 0
        %905 = vmatpush1.bf16.msra.mxu0 0
        %906 = vmatprep.subr.bf16.mxu0 0
        %907 = vmatpush1.bf16.msra.mxu0 0
        %908 = vmatprep.subr.bf16.mxu0 0
        %909 = vmatpush1.bf16.msra.mxu0 0
        %910 = vmatprep.subr.bf16.mxu0 0
        %911 = vmatpush1.bf16.msra.mxu0 0
        %912 = vmatprep.mubr.bf16.mxu0 0
        %913 = vmatmul.mubr.bf16.gmra.mrb[0].mxu0 %v781
        %v914 = vpop.f32.mrb[0].mxu0
        %v915 = vadd.f32 0.0, %v914
        %v916 = vpop.f32.mrb[0].mxu0
        %v917 = vadd.f32 0.0, %v916
        %v918 = vpop.f32.mrb[0].mxu0
        %v919 = vadd.f32 0.0, %v918
        %v920 = vpop.f32.mrb[0].mxu0
        %v921 = vadd.f32 0.0, %v920
        %922 = vmatprep.mubr.bf16.mxu0 0
        %923 = vmatmul.mubr.bf16.gmra.mrb[0].mxu0 %v782
        %v924 = vpop.f32.mrb[0].mxu0
        %v925 = vadd.f32 0.0, %v924
        %v926 = vpop.f32.mrb[0].mxu0
        %v927 = vadd.f32 0.0, %v926
        %v928 = vpop.f32.mrb[0].mxu0
        %v929 = vadd.f32 0.0, %v928
        %v930 = vpop.f32.mrb[0].mxu0
        %v931 = vadd.f32 0.0, %v930
        %932 = vdwg.mxu0
        %v933 = vadd.f32 %v693, %v915
        %v934 = vadd.f32 %v695, %v917
        %v935 = vadd.f32 %v697, %v919
        %v936 = vadd.f32 %v699, %v921
        %v937 = vadd.f32 %v703, %v925
        %v938 = vadd.f32 %v705, %v927
        %v939 = vadd.f32 %v707, %v929
        %v940 = vadd.f32 %v709, %v931
        %941 = vst [vmem:[%s233] sm:$0xff] %v933
        %942 = vst [vmem:[%s233 + $0x8] sm:$0xff] %v934
        %943 = vst [vmem:[%s233 + $0x10] sm:$0xff] %v935
        %944 = vst [vmem:[%s233 + $0x18] sm:$0xff] %v936
        %945 = vst [vmem:[%s233 + $0x20] sm:$0xff] %v937
        %946 = vst [vmem:[%s233 + $0x28] sm:$0xff] %v938
        %947 = vst [vmem:[%s233 + $0x30] sm:$0xff] %v939
        %948 = vst [vmem:[%s233 + $0x38] sm:$0xff] %v940
        %v949 = vadd.f32 %v933, %v935
        %v950 = vadd.f32 %v949, %v937
        %v951 = vadd.f32 %v950, %v939
        %v952 = vrot.slane %v951, 4
        %v953 = vadd.f32 %v951, %v952
        %v954 = vrot.slane %v953, 2
        %v955 = vadd.f32 %v953, %v954
        %v956 = vrot.slane %v955, 1
        %v957 = vadd.f32 %v955, %v956
        %v958 = vadd.f32 %v934, %v936
        %v959 = vadd.f32 %v958, %v938
        %v960 = vadd.f32 %v959, %v940
        %v961 = vrot.slane %v960, 4
        %v962 = vadd.f32 %v960, %v961
        %v963 = vrot.slane %v962, 2
        %v964 = vadd.f32 %v962, %v963
        %v965 = vrot.slane %v964, 1
        %v966 = vadd.f32 %v964, %v965
        %v969 = vcombine.low %v957, %v966
        %v971 = vunpack.c.l.s4 1966171168
        %v972 = vunpack.c.0.s8 %v971
        %v973 = vlaneseq
        %v974 = vshrl.u32 %v973, 7
        %v975 = vsub.s32 %v972, %v974
        %v976 = vrot.slane %v969, %v975
        %v978 = vunpack.c.l.s4 1966171168
        %v979 = vunpack.c.0.s8 %v978
        %v980 = vlaneseq
        %v981 = vshrl.u32 %v980, 7
        %v982 = vsub.s32 %v979, %v981
        %v983 = vrot.slane %v976, %v982
        %v985 = vlaneseq
        %vm986 = vcmp.ge.s32.totalorder %v985, 0
        %vm987 = vcmp.lt.s32.totalorder %v985, 256
        %vm988 = vmand %vm986, %vm987
        %989 = vst.msk [vmem:[%s254] sm:$0x3] %vm988, %v983
        %v990 = vmul.f32 %v933, %v933
        %v991 = vmul.f32 %v934, %v934
        %v992 = vmul.f32 %v935, %v935
        %v993 = vmul.f32 %v936, %v936
        %v994 = vmul.f32 %v937, %v937
        %v995 = vmul.f32 %v938, %v938
        %v996 = vmul.f32 %v939, %v939
        %v997 = vmul.f32 %v940, %v940
        %v998 = vadd.f32 %v990, %v992
        %v999 = vadd.f32 %v998, %v994
        %v1000 = vadd.f32 %v999, %v996
        %v1001 = vrot.slane %v1000, 4
        %v1002 = vadd.f32 %v1000, %v1001
        %v1003 = vrot.slane %v1002, 2
        %v1004 = vadd.f32 %v1002, %v1003
        %v1005 = vrot.slane %v1004, 1
        %v1006 = vadd.f32 %v1004, %v1005
        %v1007 = vadd.f32 %v991, %v993
        %v1008 = vadd.f32 %v1007, %v995
        %v1009 = vadd.f32 %v1008, %v997
        %v1010 = vrot.slane %v1009, 4
        %v1011 = vadd.f32 %v1009, %v1010
        %v1012 = vrot.slane %v1011, 2
        %v1013 = vadd.f32 %v1011, %v1012
        %v1014 = vrot.slane %v1013, 1
        %v1015 = vadd.f32 %v1013, %v1014
        %v1018 = vcombine.low %v1006, %v1015
        %v1020 = vunpack.c.l.s4 1966171168
        %v1021 = vunpack.c.0.s8 %v1020
        %v1022 = vlaneseq
        %v1023 = vshrl.u32 %v1022, 7
        %v1024 = vsub.s32 %v1021, %v1023
        %v1025 = vrot.slane %v1018, %v1024
        %v1027 = vunpack.c.l.s4 1966171168
        %v1028 = vunpack.c.0.s8 %v1027
        %v1029 = vlaneseq
        %v1030 = vshrl.u32 %v1029, 7
        %v1031 = vsub.s32 %v1028, %v1030
        %v1032 = vrot.slane %v1025, %v1031
        %1034 = vst.msk [vmem:[%s258] sm:$0x3] %vm988, %v1032
        %s1035 = sand.u32 %s97, 1
        %s1036 = scalar_lea.sflag [#allocation4], %s1035
        %s1037 = sand.u32 %s97, 1
        %s1038 = smul.addr %s1037, 64
        %s1039 = scalar_lea.vmem [#allocation5], %s1038
        %p1040 = scmp.lt.s32.totalorder %s21, 1
        %s1041 = scalar_select %p1040, %s21, 1
        %s1042 = smul.addr %s1041, 2
        %s1043 = scalar_lea.vmem %s4, %s1042
        %p1044 = scmp.lt.s32.totalorder %s21, 1
        %s1045 = scalar_select %p1044, %s21, 1
        %s1046 = smul.addr %s1045, 2
        %s1047 = scalar_lea.vmem %s5, %s1046
        // Predicated region
        $region37: #{_forward_impl.2} parent=31 // pred_check
          %p1048 = pneg %p107
        $region38: #{_forward_impl.2} parent=31 // pred_check_branch
          %1050 = sbr.rel (%p1048) target = $region40
        $region39: #{_forward_impl.2} parent=31 // pred_region
          %s1052 = ssub.s32 1024, 1024
          %1053 = vsyncadd %s1036, %s1052
          %s1054 = smul.addr %s21, 8
          %s1055 = smul.addr %s1054, 128
          %s1056 = scalar_lea.hbm %s3, %s1055
          %s1057 = sshll.u32 %s1039, 4
          %s1058 = int_to_ptr.vmem [resolvable:$true] %s1057
          %1063 = dma.vmem_to_hbm [thread:$0]  %s1058, 1024, %s1056, %s1036, 256, 256, 16
        $region40: #{_forward_impl.2} parent=31 // pred_fallthru
          _
        // Predicated region
        $region41: #{_forward_impl.2} parent=31 // pred_check
          %p1064 = pneg %p133
        $region42: #{_forward_impl.2} parent=31 // pred_check_branch
          %1066 = sbr.rel (%p1064) target = $region44
        $region43: #{_forward_impl.2} parent=31 // pred_region
          _
        $region44: #{_forward_impl.2} parent=31 // pred_fallthru
          _
        // Predicated region
        $region45: #{_forward_impl.2} parent=31 // pred_check
          %p1067 = pneg %p159
        $region46: #{_forward_impl.2} parent=31 // pred_check_branch
          %1069 = sbr.rel (%p1067) target = $region48
        $region47: #{_forward_impl.2} parent=31 // pred_region
          _
        $region48: #{_forward_impl.2} parent=31 // pred_fallthru
          _
      $region32: #{_forward_impl.2} parent=5 // pred_fallthru
        _
      %p1070 = scmp.le.s32.totalorder 2, %s16
      // Predicated region
      $region49: #{_forward_impl.2} parent=5 // pred_check
        %p1071 = pneg %p1070
      $region50: #{_forward_impl.2} parent=5 // pred_check_branch
        %1073 = sbr.rel (%p1071) target = $region52
      $region51: #{_forward_impl.2} parent=5 // pred_region
        %s1074 = ssub.s32 %s16, 2
        // Predicated region
        $region53: #{_forward_impl.2} parent=51 // pred_check
          %p1075 = pneg %p113
        $region54: #{_forward_impl.2} parent=51 // pred_check_branch
          %1077 = sbr.rel (%p1075) target = $region56
        $region55: #{_forward_impl.2} parent=51 // pred_region
          %s1078 = sand.u32 %s98, 1
          %s1079 = scalar_lea.sflag [#allocation4], %s1078
          %s1080 = sand.u32 %s98, 1
          %s1081 = smul.addr %s1080, 64
          %s1082 = scalar_lea.vmem [#allocation5], %s1081
          %1083 = dma.done %s1079, 1024
        $region56: #{_forward_impl.2} parent=51 // pred_fallthru
          _
        // Predicated region
        $region57: #{_forward_impl.2} parent=51 // pred_check
          %p1084 = pneg %p139
        $region58: #{_forward_impl.2} parent=51 // pred_check_branch
          %1086 = sbr.rel (%p1084) target = $region60
        $region59: #{_forward_impl.2} parent=51 // pred_region
          %p1087 = scmp.lt.s32.totalorder %s22, 1
          %s1088 = scalar_select %p1087, %s22, 1
          %s1089 = smul.addr %s1088, 2
          %s1090 = scalar_lea.vmem %s4, %s1089
        $region60: #{_forward_impl.2} parent=51 // pred_fallthru
          _
        // Predicated region
        $region61: #{_forward_impl.2} parent=51 // pred_check
          %p1091 = pneg %p165
        $region62: #{_forward_impl.2} parent=51 // pred_check_branch
          %1093 = sbr.rel (%p1091) target = $region64
        $region63: #{_forward_impl.2} parent=51 // pred_region
          %p1094 = scmp.lt.s32.totalorder %s22, 1
          %s1095 = scalar_select %p1094, %s22, 1
          %s1096 = smul.addr %s1095, 2
          %s1097 = scalar_lea.vmem %s5, %s1096
        $region64: #{_forward_impl.2} parent=51 // pred_fallthru
          _
      $region52: #{_forward_impl.2} parent=5 // pred_fallthru
        _
    $region6: #{_forward_impl.2} parent=1 // loop_footer
      %s20 = sadd.s32 1, %s16
    $region7: #{_forward_impl.2} parent=1 // loop_footer_branch
      %15 = sbr.rel target = $region3
    $region8: #{_forward_impl.2} parent=1 // loop_exit
      _
    %1098 = vsyncpa [#allocation3], 1
    %s1099 = scalar_lea.sflag [#allocation3], 1
    %1100 = vsyncpa %s1099, 1
    %1101 = vsyncpa [#allocation4], 1
    %s1102 = scalar_lea.sflag [#allocation4], 1
    %1103 = vsyncpa %s1102, 1

</llo_original>
